<compile_context>
chip_gen: v5e
topology: v5e:2x2
jax: 0.10.0
libtpu: 0.0.40
codegen_flags: <defaults>
</compile_context>

<pallas_src>
import functools

import jax
import jax.numpy as jnp
import numpy as np
from jax.experimental import pallas as pl
from jax.experimental.pallas import tpu as pltpu


def _vmem_capacity_bytes():
    try:
        return int(pltpu.get_tpu_info().vmem_capacity_bytes)
    except Exception:
        return 64 << 20          # conservative default (v7x per-TensorCore VMEM)


def _choose_tiling(F, Co, B, Ci, in_bytes, budget_bytes):
    """Pick (fb, co_b): lane block over the flattened frequency axis and a
    sublane-aligned block over output channels.

    Preference order:
      * fits the chip-aware VMEM budget (double-buffered tiles + accumulators)
      * >= 4 grid steps (>= 2 per v7x TensorCore -> per-core pipelining),
        else >= 2
      * low padded-tail waste (<= 25%)
      * larger lane block (512/1024 >> 128 for DMA efficiency), larger co_b.
    """
    co_opts = sorted({Co} | {c for c in (8, 16, 32, 64)
                             if c < Co and Co % c == 0})

    def tile_cost(fb, co_b):
        per_lane = (2 * 2 * B * Ci * in_bytes       # xr+xi tiles, double-buffered
                    + 2 * 2 * Ci * co_b * in_bytes  # wr+wi tiles, double-buffered
                    + 2 * 2 * B * co_b * 4          # out_r+out_i (f32), dbl-buffered
                    + 3 * B * co_b * 4)             # in-kernel f32 accumulators
        return fb * per_lane

    cands = []
    for co_b in co_opts:
        for fb in (1024, 512, 256, 128):
            if tile_cost(fb, co_b) > budget_bytes:
                continue
            n_f = pl.cdiv(F, fb)
            steps = n_f * (Co // co_b)
            waste = (n_f * fb - F) / float(n_f * fb)
            cands.append((fb, co_b, steps, waste))
    if not cands:
        # extremely unlikely with accumulator-form tiles; fall back gracefully
        return 128, min(co_opts)

    def score(c):
        fb, co_b, steps, waste = c
        return (steps >= 4, steps >= 2, waste <= 0.25, fb, -waste, co_b)

    fb, co_b, _, _ = max(cands, key=score)
    return fb, co_b


# ---------------------------------------------------------------------------
# Pallas kernel: complex spectral mode mixing
#   out[b, o, f] = sum_i x[b, i, f] * w[i, o, f]    (complex, real/imag split)
# F (lanes) is the fast axis.  The Ci contraction is a statically unrolled
# FMA chain with three f32 accumulators of output-tile size (Karatsuba
# 3-multiply complex trick, per-i sums hoisted).  Pure VPU work; no MXU, no
# Ci-sized temporaries.
# ---------------------------------------------------------------------------
def _spectral_kernel(xr_ref, xi_ref, wr_ref, wi_ref, or_ref, oi_ref):
    _, Ci, _ = xr_ref.shape
    acc_rr = jnp.zeros(or_ref.shape, jnp.float32)   # (B, Co_b, Fb)
    acc_ii = jnp.zeros(or_ref.shape, jnp.float32)
    acc_ss = jnp.zeros(or_ref.shape, jnp.float32)
    for i in range(Ci):                              # static unroll over Ci
        xr = xr_ref[:, i:i + 1, :].astype(jnp.float32)   # (B, 1, Fb)
        xi = xi_ref[:, i:i + 1, :].astype(jnp.float32)
        wr = wr_ref[i:i + 1, :, :].astype(jnp.float32)   # (1, Co_b, Fb)
        wi = wi_ref[i:i + 1, :, :].astype(jnp.float32)
        xs = xr + xi                                     # hoisted, amortized over Co_b
        ws = wr + wi                                     # hoisted, amortized over B
        acc_rr = acc_rr + xr * wr
        acc_ii = acc_ii + xi * wi
        acc_ss = acc_ss + xs * ws
    or_ref[...] = acc_rr - acc_ii
    oi_ref[...] = acc_ss - acc_rr - acc_ii


def spectral_corner_mul(xr, xi, wr, wi, *, stream_dtype=jnp.float32):
    """xr, xi: (B, Ci, F);  wr, wi: (Ci, Co, F)  ->  (B, Co, F) f32 x2."""
    B, Ci, F = xr.shape
    Co = wr.shape[1]
    in_bytes = jnp.dtype(stream_dtype).itemsize

    cap = _vmem_capacity_bytes()
    vmem_limit = int(max(min(cap - (16 << 20), 96 << 20), 16 << 20))
    fb, co_b = _choose_tiling(F, Co, B, Ci, in_bytes, (vmem_limit * 2) // 3)
    n_f = pl.cdiv(F, fb)      # ragged tail handled by Pallas masking (no pad copies)
    n_co = Co // co_b

    xr = xr.astype(stream_dtype)
    xi = xi.astype(stream_dtype)
    wr = wr.astype(stream_dtype)
    wi = wi.astype(stream_dtype)

    out_r, out_i = pl.pallas_call(
        _spectral_kernel,
        out_shape=(jax.ShapeDtypeStruct((B, Co, F), jnp.float32),
                   jax.ShapeDtypeStruct((B, Co, F), jnp.float32)),
        grid=(n_f, n_co),     # co innermost: x block index unchanged -> no re-fetch
        in_specs=[
            pl.BlockSpec((B, Ci, fb), lambda f, c: (0, 0, f)),
            pl.BlockSpec((B, Ci, fb), lambda f, c: (0, 0, f)),
            pl.BlockSpec((Ci, co_b, fb), lambda f, c: (0, c, f)),
            pl.BlockSpec((Ci, co_b, fb), lambda f, c: (0, c, f)),
        ],
        out_specs=(
            pl.BlockSpec((B, co_b, fb), lambda f, c: (0, c, f)),
            pl.BlockSpec((B, co_b, fb), lambda f, c: (0, c, f)),
        ),
        compiler_params=pltpu.CompilerParams(
            dimension_semantics=("parallel", "parallel"),
            vmem_limit_bytes=vmem_limit),
        cost_estimate=pl.CostEstimate(
            flops=6 * B * Ci * Co * F,
            transcendentals=0,
            bytes_accessed=in_bytes * (2 * B * Ci + 2 * Ci * Co) * F
                           + 4 * 2 * B * Co * F),
    )(xr, xi, wr, wi)
    return out_r, out_i


# ---------------------------------------------------------------------------
# SpectralConv3d forward
# ---------------------------------------------------------------------------
def spectral_conv3d(x, params, *, modes1, modes2, modes3,
                    stream_dtype=jnp.float32):
    """x: (B, Ci, X, Y, Z) f32;  params[w{1..4}{r,i}]: (Ci, Co, m1, m2, m3)."""
    B, Ci, X, Y, Z = x.shape
    Co = params['w1r'].shape[1]
    Zr = Z // 2 + 1
    # guard: overlapping corner writes (2*m > dim) would make block order matter
    assert modes1 <= X // 2 and modes2 <= Y // 2 and modes3 <= Zr

    x_ft = jnp.fft.rfftn(x.astype(jnp.float32), axes=(-3, -2, -1))  # (B,Ci,X,Y,Zr) c64

    corners = (
        x_ft[:, :, :modes1, :modes2, :modes3],
        x_ft[:, :, X - modes1:, :modes2, :modes3],
        x_ft[:, :, :modes1, Y - modes2:, :modes3],
        x_ft[:, :, X - modes1:, Y - modes2:, :modes3],
    )
    # real/imag extracted per-corner so XLA fuses the split into the gather
    # (no full complex intermediate); F = 4*m1*m2*m3 flattened on lanes.
    xr = jnp.stack([jnp.real(c) for c in corners], axis=2).reshape(B, Ci, -1)
    xi = jnp.stack([jnp.imag(c) for c in corners], axis=2).reshape(B, Ci, -1)

    wr = jnp.stack([params['w1r'], params['w2r'],
                    params['w3r'], params['w4r']], axis=2).reshape(Ci, Co, -1)
    wi = jnp.stack([params['w1i'], params['w2i'],
                    params['w3i'], params['w4i']], axis=2).reshape(Ci, Co, -1)

    out_r, out_i = spectral_corner_mul(xr, xi, wr, wi, stream_dtype=stream_dtype)
    out = (out_r + 1j * out_i).astype(jnp.complex64)
    out = out.reshape(B, Co, 4, modes1, modes2, modes3)

    out_ft = jnp.zeros((B, Co, X, Y, Zr), jnp.complex64)
    out_ft = out_ft.at[:, :, :modes1, :modes2, :modes3].set(out[:, :, 0])
    out_ft = out_ft.at[:, :, X - modes1:, :modes2, :modes3].set(out[:, :, 1])
    out_ft = out_ft.at[:, :, :modes1, Y - modes2:, :modes3].set(out[:, :, 2])
    out_ft = out_ft.at[:, :, X - modes1:, Y - modes2:, :modes3].set(out[:, :, 3])

    return jnp.fft.irfftn(out_ft, s=(X, Y, Z), axes=(-3, -2, -1))


# ---------------------------------------------------------------------------
# Pure-JAX reference (matches the PyTorch forward) for correctness checking
# ---------------------------------------------------------------------------
def spectral_conv3d_ref(x, params, *, modes1, modes2, modes3):
    B, Ci, X, Y, Z = x.shape
    Co = params['w1r'].shape[1]
    Zr = Z // 2 + 1
    x_ft = jnp.fft.rfftn(x.astype(jnp.float32), axes=(-3, -2, -1))
    w = {k: (params[k + 'r'] + 1j * params[k + 'i']).astype(jnp.complex64)
         for k in ('w1', 'w2', 'w3', 'w4')}
    mul = lambda a, b: jnp.einsum('bixyz,ioxyz->boxyz', a, b)
    out_ft = jnp.zeros((B, Co, X, Y, Zr), jnp.complex64)
    out_ft = out_ft.at[:, :, :modes1, :modes2, :modes3].set(
        mul(x_ft[:, :, :modes1, :modes2, :modes3], w['w1']))
    out_ft = out_ft.at[:, :, X - modes1:, :modes2, :modes3].set(
        mul(x_ft[:, :, X - modes1:, :modes2, :modes3], w['w2']))
    out_ft = out_ft.at[:, :, :modes1, Y - modes2:, :modes3].set(
        mul(x_ft[:, :, :modes1, Y - modes2:, :modes3], w['w3']))
    out_ft = out_ft.at[:, :, X - modes1:, Y - modes2:, :modes3].set(
        mul(x_ft[:, :, X - modes1:, Y - modes2:, :modes3], w['w4']))
    return jnp.fft.irfftn(out_ft, s=(X, Y, Z), axes=(-3, -2, -1))


if __name__ == "__main__":
    # Small shapes consistent with the module.
    B, Ci, Co = 2, 4, 8
    X = Y = Z = 16
    m1 = m2 = m3 = 4

    key = jax.random.PRNGKey(0)
    keys = jax.random.split(key, 9)
    x = jax.random.normal(keys[0], (B, Ci, X, Y, Z), jnp.float32)

    scale = 1.0 / (Ci * Co)   # matches torch: scale * rand(cfloat) -> U[0,1) re/im
    params = {}
    for idx, name in enumerate(('w1', 'w2', 'w3', 'w4')):
        kr, ki = keys[1 + 2 * idx], keys[2 + 2 * idx]
        params[name + 'r'] = scale * jax.random.uniform(
            kr, (Ci, Co, m1, m2, m3), jnp.float32)
        params[name + 'i'] = scale * jax.random.uniform(
            ki, (Ci, Co, m1, m2, m3), jnp.float32)

    # --- f32-streaming path (exact check against the reference) ------------
    fwd = jax.jit(functools.partial(spectral_conv3d,
                                    modes1=m1, modes2=m2, modes3=m3))
    out = jax.block_until_ready(fwd(x, params))

    assert out.shape == (B, Co, X, Y, Z)
    assert out.dtype == jnp.float32
    assert bool(jnp.all(jnp.isfinite(out)))

    ref = spectral_conv3d_ref(x, params, modes1=m1, modes2=m2, modes3=m3)
    np.testing.assert_allclose(np.asarray(out), np.asarray(ref),
                               rtol=1e-3, atol=1e-4)

    # --- bf16-streaming path (recommended on HBM-bound v5e/v6e) ------------
    fwd_bf16 = jax.jit(functools.partial(
        spectral_conv3d, modes1=m1, modes2=m2, modes3=m3,
        stream_dtype=jnp.bfloat16))
    out_bf16 = jax.block_until_ready(fwd_bf16(x, params))
    assert bool(jnp.all(jnp.isfinite(out_bf16)))
    max_err = float(jnp.max(jnp.abs(out_bf16 - ref)))
    assert max_err < 5e-2 * float(jnp.max(jnp.abs(ref)))

    print("KERNEL_OK")
</pallas_src>

<mosaic_0001>
module attributes {stable_mosaic.version = 11 : i64} {
  func.func @_spectral_kernel(%arg0: i32, %arg1: i32, %arg2: memref<2x4x128xf32, #tpu.memory_space<vmem>>, %arg3: memref<2x4x128xf32, #tpu.memory_space<vmem>>, %arg4: memref<4x8x128xf32, #tpu.memory_space<vmem>>, %arg5: memref<4x8x128xf32, #tpu.memory_space<vmem>>, %arg6: memref<2x8x128xf32, #tpu.memory_space<vmem>>, %arg7: memref<2x8x128xf32, #tpu.memory_space<vmem>>) attributes {dimension_semantics = [#tpu.dimension_semantics<parallel>, #tpu.dimension_semantics<parallel>], iteration_bounds = array<i64: 2, 1>, scalar_prefetch = 0 : i64, scratch_operands = 0 : i64, tpu.core_type = #tpu.core_type<tc>, window_params = [{transform_indices = @transform_0, window_bounds = array<i64: 2, 4, 128>}, {transform_indices = @transform_1, window_bounds = array<i64: 2, 4, 128>}, {transform_indices = @transform_2, window_bounds = array<i64: 4, 8, 128>}, {transform_indices = @transform_3, window_bounds = array<i64: 4, 8, 128>}, {transform_indices = @transform_4, window_bounds = array<i64: 2, 8, 128>}, {transform_indices = @transform_5, window_bounds = array<i64: 2, 8, 128>}]} {
    %cst = arith.constant 0.000000e+00 : f32
    %0 = vector.broadcast %cst : f32 to vector<2x8x128xf32>
    %cst_0 = arith.constant 0.000000e+00 : f32
    %1 = vector.broadcast %cst_0 : f32 to vector<2x8x128xf32>
    %cst_1 = arith.constant 0.000000e+00 : f32
    %2 = vector.broadcast %cst_1 : f32 to vector<2x8x128xf32>
    %c0 = arith.constant 0 : index
    %c0_2 = arith.constant 0 : index
    %c0_3 = arith.constant 0 : index
    %3 = vector.load %arg2[%c0, %c0_2, %c0_3] : memref<2x4x128xf32, #tpu.memory_space<vmem>>, vector<2x1x128xf32>
    %c0_4 = arith.constant 0 : index
    %c0_5 = arith.constant 0 : index
    %c0_6 = arith.constant 0 : index
    %4 = vector.load %arg3[%c0_4, %c0_5, %c0_6] : memref<2x4x128xf32, #tpu.memory_space<vmem>>, vector<2x1x128xf32>
    %c0_7 = arith.constant 0 : index
    %c0_8 = arith.constant 0 : index
    %c0_9 = arith.constant 0 : index
    %5 = vector.load %arg4[%c0_7, %c0_8, %c0_9] : memref<4x8x128xf32, #tpu.memory_space<vmem>>, vector<1x8x128xf32>
    %c0_10 = arith.constant 0 : index
    %c0_11 = arith.constant 0 : index
    %c0_12 = arith.constant 0 : index
    %6 = vector.load %arg5[%c0_10, %c0_11, %c0_12] : memref<4x8x128xf32, #tpu.memory_space<vmem>>, vector<1x8x128xf32>
    %7 = arith.addf %3, %4 : vector<2x1x128xf32>
    %8 = arith.addf %5, %6 : vector<1x8x128xf32>
    %9 = vector.broadcast %3 : vector<2x1x128xf32> to vector<2x8x128xf32>
    %10 = vector.broadcast %5 : vector<1x8x128xf32> to vector<2x8x128xf32>
    %11 = arith.mulf %9, %10 : vector<2x8x128xf32>
    %12 = arith.addf %0, %11 : vector<2x8x128xf32>
    %13 = vector.broadcast %4 : vector<2x1x128xf32> to vector<2x8x128xf32>
    %14 = vector.broadcast %6 : vector<1x8x128xf32> to vector<2x8x128xf32>
    %15 = arith.mulf %13, %14 : vector<2x8x128xf32>
    %16 = arith.addf %1, %15 : vector<2x8x128xf32>
    %17 = vector.broadcast %7 : vector<2x1x128xf32> to vector<2x8x128xf32>
    %18 = vector.broadcast %8 : vector<1x8x128xf32> to vector<2x8x128xf32>
    %19 = arith.mulf %17, %18 : vector<2x8x128xf32>
    %20 = arith.addf %2, %19 : vector<2x8x128xf32>
    %c0_13 = arith.constant 0 : index
    %c1 = arith.constant 1 : index
    %c0_14 = arith.constant 0 : index
    %21 = vector.load %arg2[%c0_13, %c1, %c0_14] : memref<2x4x128xf32, #tpu.memory_space<vmem>>, vector<2x1x128xf32>
    %c0_15 = arith.constant 0 : index
    %c1_16 = arith.constant 1 : index
    %c0_17 = arith.constant 0 : index
    %22 = vector.load %arg3[%c0_15, %c1_16, %c0_17] : memref<2x4x128xf32, #tpu.memory_space<vmem>>, vector<2x1x128xf32>
    %c1_18 = arith.constant 1 : index
    %c0_19 = arith.constant 0 : index
    %c0_20 = arith.constant 0 : index
    %23 = vector.load %arg4[%c1_18, %c0_19, %c0_20] : memref<4x8x128xf32, #tpu.memory_space<vmem>>, vector<1x8x128xf32>
    %c1_21 = arith.constant 1 : index
    %c0_22 = arith.constant 0 : index
    %c0_23 = arith.constant 0 : index
    %24 = vector.load %arg5[%c1_21, %c0_22, %c0_23] : memref<4x8x128xf32, #tpu.memory_space<vmem>>, vector<1x8x128xf32>
    %25 = arith.addf %21, %22 : vector<2x1x128xf32>
    %26 = arith.addf %23, %24 : vector<1x8x128xf32>
    %27 = vector.broadcast %21 : vector<2x1x128xf32> to vector<2x8x128xf32>
    %28 = vector.broadcast %23 : vector<1x8x128xf32> to vector<2x8x128xf32>
    %29 = arith.mulf %27, %28 : vector<2x8x128xf32>
    %30 = arith.addf %12, %29 : vector<2x8x128xf32>
    %31 = vector.broadcast %22 : vector<2x1x128xf32> to vector<2x8x128xf32>
    %32 = vector.broadcast %24 : vector<1x8x128xf32> to vector<2x8x128xf32>
    %33 = arith.mulf %31, %32 : vector<2x8x128xf32>
    %34 = arith.addf %16, %33 : vector<2x8x128xf32>
    %35 = vector.broadcast %25 : vector<2x1x128xf32> to vector<2x8x128xf32>
    %36 = vector.broadcast %26 : vector<1x8x128xf32> to vector<2x8x128xf32>
    %37 = arith.mulf %35, %36 : vector<2x8x128xf32>
    %38 = arith.addf %20, %37 : vector<2x8x128xf32>
    %c0_24 = arith.constant 0 : index
    %c2 = arith.constant 2 : index
    %c0_25 = arith.constant 0 : index
    %39 = vector.load %arg2[%c0_24, %c2, %c0_25] : memref<2x4x128xf32, #tpu.memory_space<vmem>>, vector<2x1x128xf32>
    %c0_26 = arith.constant 0 : index
    %c2_27 = arith.constant 2 : index
    %c0_28 = arith.constant 0 : index
    %40 = vector.load %arg3[%c0_26, %c2_27, %c0_28] : memref<2x4x128xf32, #tpu.memory_space<vmem>>, vector<2x1x128xf32>
    %c2_29 = arith.constant 2 : index
    %c0_30 = arith.constant 0 : index
    %c0_31 = arith.constant 0 : index
    %41 = vector.load %arg4[%c2_29, %c0_30, %c0_31] : memref<4x8x128xf32, #tpu.memory_space<vmem>>, vector<1x8x128xf32>
    %c2_32 = arith.constant 2 : index
    %c0_33 = arith.constant 0 : index
    %c0_34 = arith.constant 0 : index
    %42 = vector.load %arg5[%c2_32, %c0_33, %c0_34] : memref<4x8x128xf32, #tpu.memory_space<vmem>>, vector<1x8x128xf32>
    %43 = arith.addf %39, %40 : vector<2x1x128xf32>
    %44 = arith.addf %41, %42 : vector<1x8x128xf32>
    %45 = vector.broadcast %39 : vector<2x1x128xf32> to vector<2x8x128xf32>
    %46 = vector.broadcast %41 : vector<1x8x128xf32> to vector<2x8x128xf32>
    %47 = arith.mulf %45, %46 : vector<2x8x128xf32>
    %48 = arith.addf %30, %47 : vector<2x8x128xf32>
    %49 = vector.broadcast %40 : vector<2x1x128xf32> to vector<2x8x128xf32>
    %50 = vector.broadcast %42 : vector<1x8x128xf32> to vector<2x8x128xf32>
    %51 = arith.mulf %49, %50 : vector<2x8x128xf32>
    %52 = arith.addf %34, %51 : vector<2x8x128xf32>
    %53 = vector.broadcast %43 : vector<2x1x128xf32> to vector<2x8x128xf32>
    %54 = vector.broadcast %44 : vector<1x8x128xf32> to vector<2x8x128xf32>
    %55 = arith.mulf %53, %54 : vector<2x8x128xf32>
    %56 = arith.addf %38, %55 : vector<2x8x128xf32>
    %c0_35 = arith.constant 0 : index
    %c3 = arith.constant 3 : index
    %c0_36 = arith.constant 0 : index
    %57 = vector.load %arg2[%c0_35, %c3, %c0_36] : memref<2x4x128xf32, #tpu.memory_space<vmem>>, vector<2x1x128xf32>
    %c0_37 = arith.constant 0 : index
    %c3_38 = arith.constant 3 : index
    %c0_39 = arith.constant 0 : index
    %58 = vector.load %arg3[%c0_37, %c3_38, %c0_39] : memref<2x4x128xf32, #tpu.memory_space<vmem>>, vector<2x1x128xf32>
    %c3_40 = arith.constant 3 : index
    %c0_41 = arith.constant 0 : index
    %c0_42 = arith.constant 0 : index
    %59 = vector.load %arg4[%c3_40, %c0_41, %c0_42] : memref<4x8x128xf32, #tpu.memory_space<vmem>>, vector<1x8x128xf32>
    %c3_43 = arith.constant 3 : index
    %c0_44 = arith.constant 0 : index
    %c0_45 = arith.constant 0 : index
    %60 = vector.load %arg5[%c3_43, %c0_44, %c0_45] : memref<4x8x128xf32, #tpu.memory_space<vmem>>, vector<1x8x128xf32>
    %61 = arith.addf %57, %58 : vector<2x1x128xf32>
    %62 = arith.addf %59, %60 : vector<1x8x128xf32>
    %63 = vector.broadcast %57 : vector<2x1x128xf32> to vector<2x8x128xf32>
    %64 = vector.broadcast %59 : vector<1x8x128xf32> to vector<2x8x128xf32>
    %65 = arith.mulf %63, %64 : vector<2x8x128xf32>
    %66 = arith.addf %48, %65 : vector<2x8x128xf32>
    %67 = vector.broadcast %58 : vector<2x1x128xf32> to vector<2x8x128xf32>
    %68 = vector.broadcast %60 : vector<1x8x128xf32> to vector<2x8x128xf32>
    %69 = arith.mulf %67, %68 : vector<2x8x128xf32>
    %70 = arith.addf %52, %69 : vector<2x8x128xf32>
    %71 = vector.broadcast %61 : vector<2x1x128xf32> to vector<2x8x128xf32>
    %72 = vector.broadcast %62 : vector<1x8x128xf32> to vector<2x8x128xf32>
    %73 = arith.mulf %71, %72 : vector<2x8x128xf32>
    %74 = arith.addf %56, %73 : vector<2x8x128xf32>
    %75 = arith.subf %66, %70 : vector<2x8x128xf32>
    %c0_46 = arith.constant 0 : index
    %c0_47 = arith.constant 0 : index
    %c0_48 = arith.constant 0 : index
    %76 = vector.load %arg6[%c0_46, %c0_47, %c0_48] : memref<2x8x128xf32, #tpu.memory_space<vmem>>, vector<2x8x128xf32>
    tpu.vector_store %arg6[%c0_46, %c0_47, %c0_48], %75 {strides = array<i32>} : memref<2x8x128xf32, #tpu.memory_space<vmem>>, vector<2x8x128xf32>,
    %77 = arith.subf %74, %66 : vector<2x8x128xf32>
    %78 = arith.subf %77, %70 : vector<2x8x128xf32>
    %c0_49 = arith.constant 0 : index
    %c0_50 = arith.constant 0 : index
    %c0_51 = arith.constant 0 : index
    %79 = vector.load %arg7[%c0_49, %c0_50, %c0_51] : memref<2x8x128xf32, #tpu.memory_space<vmem>>, vector<2x8x128xf32>
    tpu.vector_store %arg7[%c0_49, %c0_50, %c0_51], %78 {strides = array<i32>} : memref<2x8x128xf32, #tpu.memory_space<vmem>>, vector<2x8x128xf32>,
    return
  }
  func.func @transform_0(%arg0: i32, %arg1: i32) -> (i32, i32, i32) {
    %c0_i32 = arith.constant 0 : i32
    %c0_i32_0 = arith.constant 0 : i32
    %c0_i32_1 = arith.constant 0 : i32
    return %c0_i32, %c0_i32_0, %arg0 : i32, i32, i32
  }
  func.func @transform_1(%arg0: i32, %arg1: i32) -> (i32, i32, i32) {
    %c0_i32 = arith.constant 0 : i32
    %c0_i32_0 = arith.constant 0 : i32
    %c0_i32_1 = arith.constant 0 : i32
    return %c0_i32, %c0_i32_0, %arg0 : i32, i32, i32
  }
  func.func @transform_2(%arg0: i32, %arg1: i32) -> (i32, i32, i32) {
    %c0_i32 = arith.constant 0 : i32
    %c0_i32_0 = arith.constant 0 : i32
    return %c0_i32, %arg1, %arg0 : i32, i32, i32
  }
  func.func @transform_3(%arg0: i32, %arg1: i32) -> (i32, i32, i32) {
    %c0_i32 = arith.constant 0 : i32
    %c0_i32_0 = arith.constant 0 : i32
    return %c0_i32, %arg1, %arg0 : i32, i32, i32
  }
  func.func @transform_4(%arg0: i32, %arg1: i32) -> (i32, i32, i32) {
    %c0_i32 = arith.constant 0 : i32
    %c0_i32_0 = arith.constant 0 : i32
    return %c0_i32, %arg1, %arg0 : i32, i32, i32
  }
  func.func @transform_5(%arg0: i32, %arg1: i32) -> (i32, i32, i32) {
    %c0_i32 = arith.constant 0 : i32
    %c0_i32_0 = arith.constant 0 : i32
    return %c0_i32, %arg1, %arg0 : i32, i32, i32
  }
}

</mosaic_0001>

<llo_original>
// kernel: spectral_conv3d.1
$region0: #{spectral_conv3d.1}
  #allocation0 [shape = 'u32[]', space=smem, size = 0x4, offset = 0x4, fixed_abs, tag = 'smem constant byte address 0x4 - core index']
  #allocation1 [shape = 'u32[72,128]{1,0:T(1,128)}', space=vmem, size = 0x9000, scoped, tag = 'internal scratch']
  %s0 = inlined_call_operand.vmem [shape: f32[2,4,256], index: 0, kind: input, shape index: {}]
  %s1 = inlined_call_operand.vmem [shape: f32[2,4,256], index: 1, kind: input, shape index: {}]
  %s2 = inlined_call_operand.vmem [shape: f32[4,8,256], index: 2, kind: input, shape index: {}]
  %s3 = inlined_call_operand.vmem [shape: f32[4,8,256], index: 3, kind: input, shape index: {}]
  %s4 = inlined_call_operand.vmem [shape: f32[2,8,256], index: 4, kind: output, shape index: {0}]
  %s5 = inlined_call_operand.vmem [shape: f32[2,8,256], index: 5, kind: output, shape index: {1}]
  %6 = xla_tuple %s4, %s5
  %s7 = sld [smem:[#allocation0]]
  $region283: #{spectral_conv3d.1} parent=0
    _
  %s9 = ssub.s32 1, %s7
  %s10 = scalar_select 0, %s9, %s7
  $region1: #{spectral_conv3d.1} parent=0
    #allocation2 [shape = 'u8[8192]{0}', space=vmem, size = 0x2000, scoped, tag = 'input window, operand 0']
    #allocation3 [shape = 'u8[8192]{0}', space=vmem, size = 0x2000, scoped, tag = 'input window, operand 1']
    #allocation4 [shape = 'u8[32768]{0}', space=vmem, size = 0x8000, scoped, tag = 'input window, operand 2']
    #allocation5 [shape = 'u8[32768]{0}', space=vmem, size = 0x8000, scoped, tag = 'input window, operand 3']
    #allocation6 [shape = 'u8[16384]{0}', space=vmem, size = 0x4000, scoped, tag = 'output window, operand 0']
    #allocation7 [shape = 'u8[16384]{0}', space=vmem, size = 0x4000, scoped, tag = 'output window, operand 1']
    loop: start=0, step=1, limit=4
    $region2: #{spectral_conv3d.1} parent=1 // loop_pre_header
      _
    $region3: #{spectral_conv3d.1} parent=1 // loop_header
      %s12 = sphi 0, %s16
      %p13 = scmp.ge.s32.totalorder %s12, 4
      %s19 = sphi 0, %s31
      %s20 = sphi 0, %s27
      %s21 = sphi 0, %s19
      %s22 = sphi 0, %s20
      %s23 = sphi 0, %s21
      %s24 = sphi 0, %s22
      %s34 = sphi 0, %s36
      %s37 = sphi 0, %s34
      %s38 = sphi 0, %s37
      %s54 = sphi 0, %s38
      %s60 = sphi 0, %s62
      %s63 = sphi 0, %s60
      %s64 = sphi 0, %s63
      %s80 = sphi 0, %s64
      %s88 = sphi 0, %s90
      %s91 = sphi 0, %s88
      %s92 = sphi 0, %s91
      %s108 = sphi 0, %s92
      %s116 = sphi 0, %s118
      %s119 = sphi 0, %s116
      %s120 = sphi 0, %s119
      %s136 = sphi 0, %s120
      %s144 = sphi 0, %s146
      %s147 = sphi 0, %s144
      %s148 = sphi 0, %s147
      %s164 = sphi 0, %s148
      %s172 = sphi 0, %s174
      %s175 = sphi 0, %s172
      %s176 = sphi 0, %s175
      %s192 = sphi 0, %s176
    $region4: #{spectral_conv3d.1} parent=1 // loop_header_branch
      %15 = sbr.rel (%p13) target = $region8
    $region5: #{spectral_conv3d.1} parent=1 // loop_body
      %s17 = ssub.s32 %s12, 1
      %s18 = ssub.s32 %s12, 2
      %s25 = sadd.s32 1, %s20
      %p26 = scmp.ge.s32.totalorder %s25, 1
      %s27 = scalar_select %p26, 0, %s25
      %s28 = sadd.s32 1, %s19
      %s29 = scalar_select %p26, %s28, %s19
      %p30 = scmp.ge.s32.totalorder %s29, 2
      %s31 = scalar_select %p30, 0, %s29
      %s32 = ssub.s32 %s19, %s31
      %p33 = scmp.eq.s32.totalorder %s32, 0
      %s35 = sadd.s32 %s34, 1
      %s36 = scalar_select %p33, %s34, %s35
      %p39 = pneg %p33
      %p40 = scmp.eq.s32.totalorder %s12, 1
      %p41 = por %p39, %p40
      %p42 = scmp.ne.s32.totalorder %s34, %s37
      %p43 = scmp.eq.s32.totalorder %s12, 0
      %p44 = por %p42, %p43
      %p45 = scmp.ne.s32.totalorder %s34, %s37
      %p46 = scmp.eq.s32.totalorder %s17, 1
      %p47 = por %p45, %p46
      %p48 = scmp.ne.s32.totalorder %s37, %s38
      %p49 = scmp.eq.s32.totalorder %s17, 0
      %p50 = por %p48, %p49
      %p51 = scmp.ne.s32.totalorder %s37, %s38
      %p52 = scmp.eq.s32.totalorder %s18, 1
      %p53 = por %p51, %p52
      %p55 = scmp.ne.s32.totalorder %s38, %s54
      %p56 = scmp.eq.s32.totalorder %s18, 0
      %p57 = por %p55, %p56
      %s58 = ssub.s32 %s19, %s31
      %p59 = scmp.eq.s32.totalorder %s58, 0
      %s61 = sadd.s32 %s60, 1
      %s62 = scalar_select %p59, %s60, %s61
      %p65 = pneg %p59
      %p66 = scmp.eq.s32.totalorder %s12, 1
      %p67 = por %p65, %p66
      %p68 = scmp.ne.s32.totalorder %s60, %s63
      %p69 = scmp.eq.s32.totalorder %s12, 0
      %p70 = por %p68, %p69
      %p71 = scmp.ne.s32.totalorder %s60, %s63
      %p72 = scmp.eq.s32.totalorder %s17, 1
      %p73 = por %p71, %p72
      %p74 = scmp.ne.s32.totalorder %s63, %s64
      %p75 = scmp.eq.s32.totalorder %s17, 0
      %p76 = por %p74, %p75
      %p77 = scmp.ne.s32.totalorder %s63, %s64
      %p78 = scmp.eq.s32.totalorder %s18, 1
      %p79 = por %p77, %p78
      %p81 = scmp.ne.s32.totalorder %s64, %s80
      %p82 = scmp.eq.s32.totalorder %s18, 0
      %p83 = por %p81, %p82
      %s84 = ssub.s32 %s20, %s27
      %s85 = ssub.s32 %s19, %s31
      %s86 = sor.u32 %s84, %s85
      %p87 = scmp.eq.s32.totalorder %s86, 0
      %s89 = sadd.s32 %s88, 1
      %s90 = scalar_select %p87, %s88, %s89
      %p93 = pneg %p87
      %p94 = scmp.eq.s32.totalorder %s12, 1
      %p95 = por %p93, %p94
      %p96 = scmp.ne.s32.totalorder %s88, %s91
      %p97 = scmp.eq.s32.totalorder %s12, 0
      %p98 = por %p96, %p97
      %p99 = scmp.ne.s32.totalorder %s88, %s91
      %p100 = scmp.eq.s32.totalorder %s17, 1
      %p101 = por %p99, %p100
      %p102 = scmp.ne.s32.totalorder %s91, %s92
      %p103 = scmp.eq.s32.totalorder %s17, 0
      %p104 = por %p102, %p103
      %p105 = scmp.ne.s32.totalorder %s91, %s92
      %p106 = scmp.eq.s32.totalorder %s18, 1
      %p107 = por %p105, %p106
      %p109 = scmp.ne.s32.totalorder %s92, %s108
      %p110 = scmp.eq.s32.totalorder %s18, 0
      %p111 = por %p109, %p110
      %s112 = ssub.s32 %s20, %s27
      %s113 = ssub.s32 %s19, %s31
      %s114 = sor.u32 %s112, %s113
      %p115 = scmp.eq.s32.totalorder %s114, 0
      %s117 = sadd.s32 %s116, 1
      %s118 = scalar_select %p115, %s116, %s117
      %p121 = pneg %p115
      %p122 = scmp.eq.s32.totalorder %s12, 1
      %p123 = por %p121, %p122
      %p124 = scmp.ne.s32.totalorder %s116, %s119
      %p125 = scmp.eq.s32.totalorder %s12, 0
      %p126 = por %p124, %p125
      %p127 = scmp.ne.s32.totalorder %s116, %s119
      %p128 = scmp.eq.s32.totalorder %s17, 1
      %p129 = por %p127, %p128
      %p130 = scmp.ne.s32.totalorder %s119, %s120
      %p131 = scmp.eq.s32.totalorder %s17, 0
      %p132 = por %p130, %p131
      %p133 = scmp.ne.s32.totalorder %s119, %s120
      %p134 = scmp.eq.s32.totalorder %s18, 1
      %p135 = por %p133, %p134
      %p137 = scmp.ne.s32.totalorder %s120, %s136
      %p138 = scmp.eq.s32.totalorder %s18, 0
      %p139 = por %p137, %p138
      %s140 = ssub.s32 %s20, %s27
      %s141 = ssub.s32 %s19, %s31
      %s142 = sor.u32 %s140, %s141
      %p143 = scmp.eq.s32.totalorder %s142, 0
      %s145 = sadd.s32 %s144, 1
      %s146 = scalar_select %p143, %s144, %s145
      %p149 = pneg %p143
      %p150 = scmp.eq.s32.totalorder %s12, 1
      %p151 = por %p149, %p150
      %p152 = scmp.ne.s32.totalorder %s144, %s147
      %p153 = scmp.eq.s32.totalorder %s12, 0
      %p154 = por %p152, %p153
      %p155 = scmp.ne.s32.totalorder %s144, %s147
      %p156 = scmp.eq.s32.totalorder %s17, 1
      %p157 = por %p155, %p156
      %p158 = scmp.ne.s32.totalorder %s147, %s148
      %p159 = scmp.eq.s32.totalorder %s17, 0
      %p160 = por %p158, %p159
      %p161 = scmp.ne.s32.totalorder %s147, %s148
      %p162 = scmp.eq.s32.totalorder %s18, 1
      %p163 = por %p161, %p162
      %p165 = scmp.ne.s32.totalorder %s148, %s164
      %p166 = scmp.eq.s32.totalorder %s18, 0
      %p167 = por %p165, %p166
      %s168 = ssub.s32 %s20, %s27
      %s169 = ssub.s32 %s19, %s31
      %s170 = sor.u32 %s168, %s169
      %p171 = scmp.eq.s32.totalorder %s170, 0
      %s173 = sadd.s32 %s172, 1
      %s174 = scalar_select %p171, %s172, %s173
      %p177 = pneg %p171
      %p178 = scmp.eq.s32.totalorder %s12, 1
      %p179 = por %p177, %p178
      %p180 = scmp.ne.s32.totalorder %s172, %s175
      %p181 = scmp.eq.s32.totalorder %s12, 0
      %p182 = por %p180, %p181
      %p183 = scmp.ne.s32.totalorder %s172, %s175
      %p184 = scmp.eq.s32.totalorder %s17, 1
      %p185 = por %p183, %p184
      %p186 = scmp.ne.s32.totalorder %s175, %s176
      %p187 = scmp.eq.s32.totalorder %s17, 0
      %p188 = por %p186, %p187
      %p189 = scmp.ne.s32.totalorder %s175, %s176
      %p190 = scmp.eq.s32.totalorder %s18, 1
      %p191 = por %p189, %p190
      %p193 = scmp.ne.s32.totalorder %s176, %s192
      %p194 = scmp.eq.s32.totalorder %s18, 0
      %p195 = por %p193, %p194
      %p196 = scmp.le.s32.totalorder 1, %s12
      %p197 = scmp.lt.s32.totalorder %s12, 3
      %p198 = pnand %p196, %p197
      %p199 = pneg %p198
      // Predicated region
      $region9: #{spectral_conv3d.1} parent=5 // pred_check
        _
      $region10: #{spectral_conv3d.1} parent=5 // pred_check_branch
        %201 = sbr.rel (%p198) target = $region12
      $region11: #{spectral_conv3d.1} parent=5 // pred_region
        %s202 = ssub.s32 %s12, 1
      $region12: #{spectral_conv3d.1} parent=5 // pred_fallthru
        _
      %p203 = scmp.lt.s32.totalorder %s12, 2
      // Predicated region
      $region13: #{spectral_conv3d.1} parent=5 // pred_check
        %p204 = pneg %p203
      $region14: #{spectral_conv3d.1} parent=5 // pred_check_branch
        %206 = sbr.rel (%p204) target = $region16
      $region15: #{spectral_conv3d.1} parent=5 // pred_region
        // Predicated region
        $region17: #{spectral_conv3d.1} parent=15 // pred_check
          %p207 = pneg %p44
        $region18: #{spectral_conv3d.1} parent=15 // pred_check_branch
          %209 = sbr.rel (%p207) target = $region20
        $region19: #{spectral_conv3d.1} parent=15 // pred_region
          %s210 = sand.u32 %s34, 1
          %s211 = sand.u32 %s34, 1
          %s212 = smul.addr %s211, 8
          %s213 = scalar_lea.vmem [#allocation2], %s212
          %s214 = smul.addr %s19, 4
          %s215 = scalar_lea.vmem %s0, %s214
          // Predicated region
          $region21: #{spectral_conv3d.1} parent=19 // pred_check
            _
          $region22: #{spectral_conv3d.1} parent=19 // pred_check_branch
            %217 = sbr.rel (0) target = $region24
          $region23: #{spectral_conv3d.1} parent=19 // pred_region
            // Predicated region
            $region25: #{spectral_conv3d.1} parent=23 // pred_check
              _
            $region26: #{spectral_conv3d.1} parent=23 // pred_check_branch
              %219 = sbr.rel target = $region28
            $region27: #{spectral_conv3d.1} parent=23 // pred_region
              // Predicated region
              $region40: #{spectral_conv3d.1} parent=27 // pred_check
                _
              $region41: #{spectral_conv3d.1} parent=27 // pred_check_branch
                %237 = sbr.rel (0) target = $region43
              $region42: #{spectral_conv3d.1} parent=27 // pred_region
                loop: start=0, step=1, limit=1
                $region44: #{spectral_conv3d.1} parent=42 // loop_pre_header
                  _
                $region45: #{spectral_conv3d.1} parent=42 // loop_header
                  %s239 = sphi 0, %s243
                  %p240 = scmp.ge.s32.totalorder %s239, 1
                  %s244 = sphi %s215, %s215
                  %s245 = sphi %s213, %s213
                $region46: #{spectral_conv3d.1} parent=42 // loop_header_branch
                  %242 = sbr.rel (%p240) target = $region50
                $region47: #{spectral_conv3d.1} parent=42 // loop_body
                  _
                $region48: #{spectral_conv3d.1} parent=42 // loop_footer
                  %s243 = sadd.s32 1, %s239
                $region49: #{spectral_conv3d.1} parent=42 // loop_footer_branch
                  %238 = sbr.rel target = $region45
                $region50: #{spectral_conv3d.1} parent=42 // loop_exit
                  _
                %s247 = ssub.s32 16, 1
                loop: start=0, step=1, limit=1
                $region51: #{spectral_conv3d.1} parent=42 // loop_pre_header
                  _
                $region52: #{spectral_conv3d.1} parent=42 // loop_header
                  %s249 = sphi 0, %s253
                  %p250 = scmp.ge.s32.totalorder %s249, 1
                  %s254 = sphi %s215, %s215
                  %s255 = sphi %s213, %s213
                $region53: #{spectral_conv3d.1} parent=42 // loop_header_branch
                  %252 = sbr.rel (%p250) target = $region57
                $region54: #{spectral_conv3d.1} parent=42 // loop_body
                  %v256 = vld [vmem:[%s254] sm:%s247]
                  %257 = vst [vmem:[%s255] sm:%s247] %v256
                  %v258 = vld [vmem:[%s254 + $0x8] sm:%s247]
                  %259 = vst [vmem:[%s255 + $0x4] sm:%s247] %v258
                $region55: #{spectral_conv3d.1} parent=42 // loop_footer
                  %s253 = sadd.s32 1, %s249
                $region56: #{spectral_conv3d.1} parent=42 // loop_footer_branch
                  %248 = sbr.rel target = $region52
                $region57: #{spectral_conv3d.1} parent=42 // loop_exit
                  _
              $region43: #{spectral_conv3d.1} parent=27 // pred_fallthru
                _
            $region28: #{spectral_conv3d.1} parent=23 // pred_fallthru
              _
            // Predicated region
            $region29: #{spectral_conv3d.1} parent=23 // pred_check
              _
            $region30: #{spectral_conv3d.1} parent=23 // pred_check_branch
              %221 = sbr.rel (0) target = $region32
            $region31: #{spectral_conv3d.1} parent=23 // pred_region
              %s223 = ssub.s32 16, 1
              loop: start=0, step=1, limit=1
              $region33: #{spectral_conv3d.1} parent=31 // loop_pre_header
                _
              $region34: #{spectral_conv3d.1} parent=31 // loop_header
                %s225 = sphi 0, %s229
                %p226 = scmp.ge.s32.totalorder %s225, 1
                %s230 = sphi %s215, %s215
                %s231 = sphi %s213, %s213
              $region35: #{spectral_conv3d.1} parent=31 // loop_header_branch
                %228 = sbr.rel (%p226) target = $region39
              $region36: #{spectral_conv3d.1} parent=31 // loop_body
                %v232 = vld [vmem:[%s230] sm:%s223]
                %233 = vst [vmem:[%s231] sm:%s223] %v232
                %v234 = vld [vmem:[%s230 + $0x8] sm:%s223]
                %235 = vst [vmem:[%s231 + $0x4] sm:%s223] %v234
              $region37: #{spectral_conv3d.1} parent=31 // loop_footer
                %s229 = sadd.s32 1, %s225
              $region38: #{spectral_conv3d.1} parent=31 // loop_footer_branch
                %224 = sbr.rel target = $region34
              $region39: #{spectral_conv3d.1} parent=31 // loop_exit
                _
            $region32: #{spectral_conv3d.1} parent=23 // pred_fallthru
              _
          $region24: #{spectral_conv3d.1} parent=19 // pred_fallthru
            _
          %260 = vnop
        $region20: #{spectral_conv3d.1} parent=15 // pred_fallthru
          _
        // Predicated region
        $region58: #{spectral_conv3d.1} parent=15 // pred_check
          %p261 = pneg %p70
        $region59: #{spectral_conv3d.1} parent=15 // pred_check_branch
          %263 = sbr.rel (%p261) target = $region61
        $region60: #{spectral_conv3d.1} parent=15 // pred_region
          %s264 = sand.u32 %s60, 1
          %s265 = sand.u32 %s60, 1
          %s266 = smul.addr %s265, 8
          %s267 = scalar_lea.vmem [#allocation3], %s266
          %s268 = smul.addr %s19, 4
          %s269 = scalar_lea.vmem %s1, %s268
          // Predicated region
          $region62: #{spectral_conv3d.1} parent=60 // pred_check
            _
          $region63: #{spectral_conv3d.1} parent=60 // pred_check_branch
            %271 = sbr.rel (0) target = $region65
          $region64: #{spectral_conv3d.1} parent=60 // pred_region
            // Predicated region
            $region66: #{spectral_conv3d.1} parent=64 // pred_check
              _
            $region67: #{spectral_conv3d.1} parent=64 // pred_check_branch
              %273 = sbr.rel target = $region69
            $region68: #{spectral_conv3d.1} parent=64 // pred_region
              // Predicated region
              $region81: #{spectral_conv3d.1} parent=68 // pred_check
                _
              $region82: #{spectral_conv3d.1} parent=68 // pred_check_branch
                %291 = sbr.rel (0) target = $region84
              $region83: #{spectral_conv3d.1} parent=68 // pred_region
                loop: start=0, step=1, limit=1
                $region85: #{spectral_conv3d.1} parent=83 // loop_pre_header
                  _
                $region86: #{spectral_conv3d.1} parent=83 // loop_header
                  %s293 = sphi 0, %s297
                  %p294 = scmp.ge.s32.totalorder %s293, 1
                  %s298 = sphi %s269, %s269
                  %s299 = sphi %s267, %s267
                $region87: #{spectral_conv3d.1} parent=83 // loop_header_branch
                  %296 = sbr.rel (%p294) target = $region91
                $region88: #{spectral_conv3d.1} parent=83 // loop_body
                  _
                $region89: #{spectral_conv3d.1} parent=83 // loop_footer
                  %s297 = sadd.s32 1, %s293
                $region90: #{spectral_conv3d.1} parent=83 // loop_footer_branch
                  %292 = sbr.rel target = $region86
                $region91: #{spectral_conv3d.1} parent=83 // loop_exit
                  _
                %s301 = ssub.s32 16, 1
                loop: start=0, step=1, limit=1
                $region92: #{spectral_conv3d.1} parent=83 // loop_pre_header
                  _
                $region93: #{spectral_conv3d.1} parent=83 // loop_header
                  %s303 = sphi 0, %s307
                  %p304 = scmp.ge.s32.totalorder %s303, 1
                  %s308 = sphi %s269, %s269
                  %s309 = sphi %s267, %s267
                $region94: #{spectral_conv3d.1} parent=83 // loop_header_branch
                  %306 = sbr.rel (%p304) target = $region98
                $region95: #{spectral_conv3d.1} parent=83 // loop_body
                  %v310 = vld [vmem:[%s308] sm:%s301]
                  %311 = vst [vmem:[%s309] sm:%s301] %v310
                  %v312 = vld [vmem:[%s308 + $0x8] sm:%s301]
                  %313 = vst [vmem:[%s309 + $0x4] sm:%s301] %v312
                $region96: #{spectral_conv3d.1} parent=83 // loop_footer
                  %s307 = sadd.s32 1, %s303
                $region97: #{spectral_conv3d.1} parent=83 // loop_footer_branch
                  %302 = sbr.rel target = $region93
                $region98: #{spectral_conv3d.1} parent=83 // loop_exit
                  _
              $region84: #{spectral_conv3d.1} parent=68 // pred_fallthru
                _
            $region69: #{spectral_conv3d.1} parent=64 // pred_fallthru
              _
            // Predicated region
            $region70: #{spectral_conv3d.1} parent=64 // pred_check
              _
            $region71: #{spectral_conv3d.1} parent=64 // pred_check_branch
              %275 = sbr.rel (0) target = $region73
            $region72: #{spectral_conv3d.1} parent=64 // pred_region
              %s277 = ssub.s32 16, 1
              loop: start=0, step=1, limit=1
              $region74: #{spectral_conv3d.1} parent=72 // loop_pre_header
                _
              $region75: #{spectral_conv3d.1} parent=72 // loop_header
                %s279 = sphi 0, %s283
                %p280 = scmp.ge.s32.totalorder %s279, 1
                %s284 = sphi %s269, %s269
                %s285 = sphi %s267, %s267
              $region76: #{spectral_conv3d.1} parent=72 // loop_header_branch
                %282 = sbr.rel (%p280) target = $region80
              $region77: #{spectral_conv3d.1} parent=72 // loop_body
                %v286 = vld [vmem:[%s284] sm:%s277]
                %287 = vst [vmem:[%s285] sm:%s277] %v286
                %v288 = vld [vmem:[%s284 + $0x8] sm:%s277]
                %289 = vst [vmem:[%s285 + $0x4] sm:%s277] %v288
              $region78: #{spectral_conv3d.1} parent=72 // loop_footer
                %s283 = sadd.s32 1, %s279
              $region79: #{spectral_conv3d.1} parent=72 // loop_footer_branch
                %278 = sbr.rel target = $region75
              $region80: #{spectral_conv3d.1} parent=72 // loop_exit
                _
            $region73: #{spectral_conv3d.1} parent=64 // pred_fallthru
              _
          $region65: #{spectral_conv3d.1} parent=60 // pred_fallthru
            _
          %314 = vnop
        $region61: #{spectral_conv3d.1} parent=15 // pred_fallthru
          _
        // Predicated region
        $region99: #{spectral_conv3d.1} parent=15 // pred_check
          %p315 = pneg %p98
        $region100: #{spectral_conv3d.1} parent=15 // pred_check_branch
          %317 = sbr.rel (%p315) target = $region102
        $region101: #{spectral_conv3d.1} parent=15 // pred_region
          %s318 = sand.u32 %s88, 1
          %s319 = sand.u32 %s88, 1
          %s320 = smul.addr %s319, 32
          %s321 = scalar_lea.vmem [#allocation4], %s320
          %s322 = smul.addr %s20, 2
          %s323 = sadd.s32 %s19, %s322
          %s324 = smul.addr %s323, 8
          %s325 = scalar_lea.vmem %s2, %s324
          // Predicated region
          $region103: #{spectral_conv3d.1} parent=101 // pred_check
            _
          $region104: #{spectral_conv3d.1} parent=101 // pred_check_branch
            %327 = sbr.rel (0) target = $region106
          $region105: #{spectral_conv3d.1} parent=101 // pred_region
            // Predicated region
            $region107: #{spectral_conv3d.1} parent=105 // pred_check
              _
            $region108: #{spectral_conv3d.1} parent=105 // pred_check_branch
              %329 = sbr.rel (0) target = $region110
            $region109: #{spectral_conv3d.1} parent=105 // pred_region
              // Predicated region
              $region122: #{spectral_conv3d.1} parent=109 // pred_check
                _
              $region123: #{spectral_conv3d.1} parent=109 // pred_check_branch
                %351 = sbr.rel (0) target = $region125
              $region124: #{spectral_conv3d.1} parent=109 // pred_region
                loop: start=0, step=1, limit=1
                $region126: #{spectral_conv3d.1} parent=124 // loop_pre_header
                  _
                $region127: #{spectral_conv3d.1} parent=124 // loop_header
                  %s353 = sphi 0, %s357
                  %p354 = scmp.ge.s32.totalorder %s353, 1
                  %s358 = sphi %s325, %s325
                  %s359 = sphi %s321, %s321
                $region128: #{spectral_conv3d.1} parent=124 // loop_header_branch
                  %356 = sbr.rel (%p354) target = $region132
                $region129: #{spectral_conv3d.1} parent=124 // loop_body
                  %v360 = vld [vmem:[%s358] sm:$0xff]
                  %361 = vst [vmem:[%s359] sm:$0xff] %v360
                  %v362 = vld [vmem:[%s358 + $0x10] sm:$0xff]
                  %363 = vst [vmem:[%s359 + $0x8] sm:$0xff] %v362
                  %v364 = vld [vmem:[%s358 + $0x20] sm:$0xff]
                  %365 = vst [vmem:[%s359 + $0x10] sm:$0xff] %v364
                  %v366 = vld [vmem:[%s358 + $0x30] sm:$0xff]
                  %367 = vst [vmem:[%s359 + $0x18] sm:$0xff] %v366
                $region130: #{spectral_conv3d.1} parent=124 // loop_footer
                  %s357 = sadd.s32 1, %s353
                $region131: #{spectral_conv3d.1} parent=124 // loop_footer_branch
                  %352 = sbr.rel target = $region127
                $region132: #{spectral_conv3d.1} parent=124 // loop_exit
                  _
              $region125: #{spectral_conv3d.1} parent=109 // pred_fallthru
                _
              // Predicated region
              $region133: #{spectral_conv3d.1} parent=109 // pred_check
                _
              $region134: #{spectral_conv3d.1} parent=109 // pred_check_branch
                %369 = sbr.rel target = $region136
              $region135: #{spectral_conv3d.1} parent=109 // pred_region
                _
              $region136: #{spectral_conv3d.1} parent=109 // pred_fallthru
                _
            $region110: #{spectral_conv3d.1} parent=105 // pred_fallthru
              _
            // Predicated region
            $region111: #{spectral_conv3d.1} parent=105 // pred_check
              _
            $region112: #{spectral_conv3d.1} parent=105 // pred_check_branch
              %331 = sbr.rel target = $region114
            $region113: #{spectral_conv3d.1} parent=105 // pred_region
              %s333 = ssub.s32 256, 1
              loop: start=0, step=1, limit=1
              $region115: #{spectral_conv3d.1} parent=113 // loop_pre_header
                _
              $region116: #{spectral_conv3d.1} parent=113 // loop_header
                %s335 = sphi 0, %s339
                %p336 = scmp.ge.s32.totalorder %s335, 1
                %s340 = sphi %s325, %s325
                %s341 = sphi %s321, %s321
              $region117: #{spectral_conv3d.1} parent=113 // loop_header_branch
                %338 = sbr.rel (%p336) target = $region121
              $region118: #{spectral_conv3d.1} parent=113 // loop_body
                %v342 = vld [vmem:[%s340] sm:%s333]
                %343 = vst [vmem:[%s341] sm:%s333] %v342
                %v344 = vld [vmem:[%s340 + $0x10] sm:%s333]
                %345 = vst [vmem:[%s341 + $0x8] sm:%s333] %v344
                %v346 = vld [vmem:[%s340 + $0x20] sm:%s333]
                %347 = vst [vmem:[%s341 + $0x10] sm:%s333] %v346
                %v348 = vld [vmem:[%s340 + $0x30] sm:%s333]
                %349 = vst [vmem:[%s341 + $0x18] sm:%s333] %v348
              $region119: #{spectral_conv3d.1} parent=113 // loop_footer
                %s339 = sadd.s32 1, %s335
              $region120: #{spectral_conv3d.1} parent=113 // loop_footer_branch
                %334 = sbr.rel target = $region116
              $region121: #{spectral_conv3d.1} parent=113 // loop_exit
                _
            $region114: #{spectral_conv3d.1} parent=105 // pred_fallthru
              _
          $region106: #{spectral_conv3d.1} parent=101 // pred_fallthru
            _
          %370 = vnop
        $region102: #{spectral_conv3d.1} parent=15 // pred_fallthru
          _
        // Predicated region
        $region137: #{spectral_conv3d.1} parent=15 // pred_check
          %p371 = pneg %p126
        $region138: #{spectral_conv3d.1} parent=15 // pred_check_branch
          %373 = sbr.rel (%p371) target = $region140
        $region139: #{spectral_conv3d.1} parent=15 // pred_region
          %s374 = sand.u32 %s116, 1
          %s375 = sand.u32 %s116, 1
          %s376 = smul.addr %s375, 32
          %s377 = scalar_lea.vmem [#allocation5], %s376
          %s378 = smul.addr %s20, 2
          %s379 = sadd.s32 %s19, %s378
          %s380 = smul.addr %s379, 8
          %s381 = scalar_lea.vmem %s3, %s380
          // Predicated region
          $region141: #{spectral_conv3d.1} parent=139 // pred_check
            _
          $region142: #{spectral_conv3d.1} parent=139 // pred_check_branch
            %383 = sbr.rel (0) target = $region144
          $region143: #{spectral_conv3d.1} parent=139 // pred_region
            // Predicated region
            $region145: #{spectral_conv3d.1} parent=143 // pred_check
              _
            $region146: #{spectral_conv3d.1} parent=143 // pred_check_branch
              %385 = sbr.rel (0) target = $region148
            $region147: #{spectral_conv3d.1} parent=143 // pred_region
              // Predicated region
              $region160: #{spectral_conv3d.1} parent=147 // pred_check
                _
              $region161: #{spectral_conv3d.1} parent=147 // pred_check_branch
                %407 = sbr.rel (0) target = $region163
              $region162: #{spectral_conv3d.1} parent=147 // pred_region
                loop: start=0, step=1, limit=1
                $region164: #{spectral_conv3d.1} parent=162 // loop_pre_header
                  _
                $region165: #{spectral_conv3d.1} parent=162 // loop_header
                  %s409 = sphi 0, %s413
                  %p410 = scmp.ge.s32.totalorder %s409, 1
                  %s414 = sphi %s381, %s381
                  %s415 = sphi %s377, %s377
                $region166: #{spectral_conv3d.1} parent=162 // loop_header_branch
                  %412 = sbr.rel (%p410) target = $region170
                $region167: #{spectral_conv3d.1} parent=162 // loop_body
                  %v416 = vld [vmem:[%s414] sm:$0xff]
                  %417 = vst [vmem:[%s415] sm:$0xff] %v416
                  %v418 = vld [vmem:[%s414 + $0x10] sm:$0xff]
                  %419 = vst [vmem:[%s415 + $0x8] sm:$0xff] %v418
                  %v420 = vld [vmem:[%s414 + $0x20] sm:$0xff]
                  %421 = vst [vmem:[%s415 + $0x10] sm:$0xff] %v420
                  %v422 = vld [vmem:[%s414 + $0x30] sm:$0xff]
                  %423 = vst [vmem:[%s415 + $0x18] sm:$0xff] %v422
                $region168: #{spectral_conv3d.1} parent=162 // loop_footer
                  %s413 = sadd.s32 1, %s409
                $region169: #{spectral_conv3d.1} parent=162 // loop_footer_branch
                  %408 = sbr.rel target = $region165
                $region170: #{spectral_conv3d.1} parent=162 // loop_exit
                  _
              $region163: #{spectral_conv3d.1} parent=147 // pred_fallthru
                _
              // Predicated region
              $region171: #{spectral_conv3d.1} parent=147 // pred_check
                _
              $region172: #{spectral_conv3d.1} parent=147 // pred_check_branch
                %425 = sbr.rel target = $region174
              $region173: #{spectral_conv3d.1} parent=147 // pred_region
                _
              $region174: #{spectral_conv3d.1} parent=147 // pred_fallthru
                _
            $region148: #{spectral_conv3d.1} parent=143 // pred_fallthru
              _
            // Predicated region
            $region149: #{spectral_conv3d.1} parent=143 // pred_check
              _
            $region150: #{spectral_conv3d.1} parent=143 // pred_check_branch
              %387 = sbr.rel target = $region152
            $region151: #{spectral_conv3d.1} parent=143 // pred_region
              %s389 = ssub.s32 256, 1
              loop: start=0, step=1, limit=1
              $region153: #{spectral_conv3d.1} parent=151 // loop_pre_header
                _
              $region154: #{spectral_conv3d.1} parent=151 // loop_header
                %s391 = sphi 0, %s395
                %p392 = scmp.ge.s32.totalorder %s391, 1
                %s396 = sphi %s381, %s381
                %s397 = sphi %s377, %s377
              $region155: #{spectral_conv3d.1} parent=151 // loop_header_branch
                %394 = sbr.rel (%p392) target = $region159
              $region156: #{spectral_conv3d.1} parent=151 // loop_body
                %v398 = vld [vmem:[%s396] sm:%s389]
                %399 = vst [vmem:[%s397] sm:%s389] %v398
                %v400 = vld [vmem:[%s396 + $0x10] sm:%s389]
                %401 = vst [vmem:[%s397 + $0x8] sm:%s389] %v400
                %v402 = vld [vmem:[%s396 + $0x20] sm:%s389]
                %403 = vst [vmem:[%s397 + $0x10] sm:%s389] %v402
                %v404 = vld [vmem:[%s396 + $0x30] sm:%s389]
                %405 = vst [vmem:[%s397 + $0x18] sm:%s389] %v404
              $region157: #{spectral_conv3d.1} parent=151 // loop_footer
                %s395 = sadd.s32 1, %s391
              $region158: #{spectral_conv3d.1} parent=151 // loop_footer_branch
                %390 = sbr.rel target = $region154
              $region159: #{spectral_conv3d.1} parent=151 // loop_exit
                _
            $region152: #{spectral_conv3d.1} parent=143 // pred_fallthru
              _
          $region144: #{spectral_conv3d.1} parent=139 // pred_fallthru
            _
          %426 = vnop
        $region140: #{spectral_conv3d.1} parent=15 // pred_fallthru
          _
      $region16: #{spectral_conv3d.1} parent=5 // pred_fallthru
        _
      %p427 = scmp.le.s32.totalorder 1, %s12
      %p428 = scmp.lt.s32.totalorder %s12, 3
      %p429 = pnand %p427, %p428
      %p430 = pneg %p429
      // Predicated region
      $region175: #{spectral_conv3d.1} parent=5 // pred_check
        _
      $region176: #{spectral_conv3d.1} parent=5 // pred_check_branch
        %432 = sbr.rel (%p429) target = $region178
      $region177: #{spectral_conv3d.1} parent=5 // pred_region
        %s433 = ssub.s32 %s12, 1
        %s434 = sand.u32 %s37, 1
        %s435 = sand.u32 %s37, 1
        %s436 = smul.addr %s435, 8
        %s437 = scalar_lea.vmem [#allocation2], %s436
        // Predicated region
        $region179: #{spectral_conv3d.1} parent=177 // pred_check
          %p438 = pneg %p50
        $region180: #{spectral_conv3d.1} parent=177 // pred_check_branch
          %440 = sbr.rel (%p438) target = $region182
        $region181: #{spectral_conv3d.1} parent=177 // pred_region
          _
        $region182: #{spectral_conv3d.1} parent=177 // pred_fallthru
          _
        %s441 = sand.u32 %s63, 1
        %s442 = sand.u32 %s63, 1
        %s443 = smul.addr %s442, 8
        %s444 = scalar_lea.vmem [#allocation3], %s443
        // Predicated region
        $region183: #{spectral_conv3d.1} parent=177 // pred_check
          %p445 = pneg %p76
        $region184: #{spectral_conv3d.1} parent=177 // pred_check_branch
          %447 = sbr.rel (%p445) target = $region186
        $region185: #{spectral_conv3d.1} parent=177 // pred_region
          _
        $region186: #{spectral_conv3d.1} parent=177 // pred_fallthru
          _
        %s448 = sand.u32 %s91, 1
        %s449 = sand.u32 %s91, 1
        %s450 = smul.addr %s449, 32
        %s451 = scalar_lea.vmem [#allocation4], %s450
        // Predicated region
        $region187: #{spectral_conv3d.1} parent=177 // pred_check
          %p452 = pneg %p104
        $region188: #{spectral_conv3d.1} parent=177 // pred_check_branch
          %454 = sbr.rel (%p452) target = $region190
        $region189: #{spectral_conv3d.1} parent=177 // pred_region
          _
        $region190: #{spectral_conv3d.1} parent=177 // pred_fallthru
          _
        %s455 = sand.u32 %s119, 1
        %s456 = sand.u32 %s119, 1
        %s457 = smul.addr %s456, 32
        %s458 = scalar_lea.vmem [#allocation5], %s457
        // Predicated region
        $region191: #{spectral_conv3d.1} parent=177 // pred_check
          %p459 = pneg %p132
        $region192: #{spectral_conv3d.1} parent=177 // pred_check_branch
          %461 = sbr.rel (%p459) target = $region194
        $region193: #{spectral_conv3d.1} parent=177 // pred_region
          _
        $region194: #{spectral_conv3d.1} parent=177 // pred_fallthru
          _
        %s462 = sand.u32 %s37, 1
        %s463 = sand.u32 %s37, 1
        %s464 = smul.addr %s463, 8
        %s465 = scalar_lea.vmem [#allocation2], %s464
        %p466 = pneg %p50
        %p467 = pneg %p47
        %s468 = sand.u32 %s63, 1
        %s469 = sand.u32 %s63, 1
        %s470 = smul.addr %s469, 8
        %s471 = scalar_lea.vmem [#allocation3], %s470
        %p472 = pneg %p76
        %p473 = pneg %p73
        %s474 = sand.u32 %s91, 1
        %s475 = sand.u32 %s91, 1
        %s476 = smul.addr %s475, 32
        %s477 = scalar_lea.vmem [#allocation4], %s476
        %p478 = pneg %p104
        %p479 = pneg %p101
        %s480 = sand.u32 %s119, 1
        %s481 = sand.u32 %s119, 1
        %s482 = smul.addr %s481, 32
        %s483 = scalar_lea.vmem [#allocation5], %s482
        %p484 = pneg %p132
        %p485 = pneg %p129
        %p486 = pneg %p160
        %p487 = pneg %p157
        %s488 = sand.u32 %s147, 1
        %s489 = sand.u32 %s147, 1
        %s490 = smul.addr %s489, 16
        %s491 = scalar_lea.vmem [#allocation6], %s490
        %p492 = pneg %p188
        %p493 = pneg %p185
        %s494 = sand.u32 %s175, 1
        %s495 = sand.u32 %s175, 1
        %s496 = smul.addr %s495, 16
        %s497 = scalar_lea.vmem [#allocation7], %s496
        %v498 = vld [vmem:[%s437] sm:$0x1]
        %v499 = vld [vmem:[%s437 + $0x4] sm:$0x1]
        %v500 = vld [vmem:[%s444] sm:$0x1]
        %v501 = vld [vmem:[%s444 + $0x4] sm:$0x1]
        %v502 = vld [vmem:[%s451] sm:$0xff]
        %v503 = vld [vmem:[%s458] sm:$0xff]
        %v504 = vadd.f32 %v498, %v500
        %v505 = vadd.f32 %v499, %v501
        %v506 = vadd.f32 %v502, %v503
        %v507 = vperm.slane %v498, 0
        %v508 = vperm.slane %v499, 0
        %v509 = vmul.f32 %v507, %v502
        %v510 = vmul.f32 %v508, %v502
        %v511 = vadd.f32 %v509, 0.0
        %v512 = vadd.f32 %v510, 0.0
        %v513 = vperm.slane %v500, 0
        %v514 = vperm.slane %v501, 0
        %v515 = vmul.f32 %v513, %v503
        %v516 = vmul.f32 %v514, %v503
        %v517 = vadd.f32 %v515, 0.0
        %v518 = vadd.f32 %v516, 0.0
        %v519 = vperm.slane %v504, 0
        %v520 = vperm.slane %v505, 0
        %v521 = vmul.f32 %v519, %v506
        %v522 = vmul.f32 %v520, %v506
        %v523 = vadd.f32 %v521, 0.0
        %v524 = vadd.f32 %v522, 0.0
        %v525 = vld [vmem:[%s437 + $0x1] sm:$0x1]
        %v526 = vld [vmem:[%s437 + $0x5] sm:$0x1]
        %v527 = vld [vmem:[%s444 + $0x1] sm:$0x1]
        %v528 = vld [vmem:[%s444 + $0x5] sm:$0x1]
        %s529 = scalar_lea.vmem %s451, 8 [#allocation4]
        %v530 = vld [vmem:[%s529] sm:$0xff]
        %s531 = scalar_lea.vmem %s458, 8 [#allocation5]
        %v532 = vld [vmem:[%s531] sm:$0xff]
        %v533 = vadd.f32 %v525, %v527
        %v534 = vadd.f32 %v526, %v528
        %v535 = vadd.f32 %v530, %v532
        %v536 = vperm.slane %v525, 0
        %v537 = vperm.slane %v526, 0
        %v538 = vmul.f32 %v536, %v530
        %v539 = vmul.f32 %v537, %v530
        %v540 = vadd.f32 %v511, %v538
        %v541 = vadd.f32 %v512, %v539
        %v542 = vperm.slane %v527, 0
        %v543 = vperm.slane %v528, 0
        %v544 = vmul.f32 %v542, %v532
        %v545 = vmul.f32 %v543, %v532
        %v546 = vadd.f32 %v517, %v544
        %v547 = vadd.f32 %v518, %v545
        %v548 = vperm.slane %v533, 0
        %v549 = vperm.slane %v534, 0
        %v550 = vmul.f32 %v548, %v535
        %v551 = vmul.f32 %v549, %v535
        %v552 = vadd.f32 %v523, %v550
        %v553 = vadd.f32 %v524, %v551
        %v554 = vld [vmem:[%s437 + $0x2] sm:$0x1]
        %v555 = vld [vmem:[%s437 + $0x6] sm:$0x1]
        %v556 = vld [vmem:[%s444 + $0x2] sm:$0x1]
        %v557 = vld [vmem:[%s444 + $0x6] sm:$0x1]
        %s558 = scalar_lea.vmem %s451, 16 [#allocation4]
        %v559 = vld [vmem:[%s558] sm:$0xff]
        %s560 = scalar_lea.vmem %s458, 16 [#allocation5]
        %v561 = vld [vmem:[%s560] sm:$0xff]
        %v562 = vadd.f32 %v554, %v556
        %v563 = vadd.f32 %v555, %v557
        %v564 = vadd.f32 %v559, %v561
        %v565 = vperm.slane %v554, 0
        %v566 = vperm.slane %v555, 0
        %v567 = vmul.f32 %v565, %v559
        %v568 = vmul.f32 %v566, %v559
        %v569 = vadd.f32 %v540, %v567
        %v570 = vadd.f32 %v541, %v568
        %v571 = vperm.slane %v556, 0
        %v572 = vperm.slane %v557, 0
        %v573 = vmul.f32 %v571, %v561
        %v574 = vmul.f32 %v572, %v561
        %v575 = vadd.f32 %v546, %v573
        %v576 = vadd.f32 %v547, %v574
        %v577 = vperm.slane %v562, 0
        %v578 = vperm.slane %v563, 0
        %v579 = vmul.f32 %v577, %v564
        %v580 = vmul.f32 %v578, %v564
        %v581 = vadd.f32 %v552, %v579
        %v582 = vadd.f32 %v553, %v580
        %v583 = vld [vmem:[%s437 + $0x3] sm:$0x1]
        %v584 = vld [vmem:[%s437 + $0x7] sm:$0x1]
        %v585 = vld [vmem:[%s444 + $0x3] sm:$0x1]
        %v586 = vld [vmem:[%s444 + $0x7] sm:$0x1]
        %s587 = scalar_lea.vmem %s451, 24 [#allocation4]
        %v588 = vld [vmem:[%s587] sm:$0xff]
        %s589 = scalar_lea.vmem %s458, 24 [#allocation5]
        %v590 = vld [vmem:[%s589] sm:$0xff]
        %v591 = vadd.f32 %v583, %v585
        %v592 = vadd.f32 %v584, %v586
        %v593 = vadd.f32 %v588, %v590
        %v594 = vperm.slane %v583, 0
        %v595 = vperm.slane %v584, 0
        %v596 = vmul.f32 %v594, %v588
        %v597 = vmul.f32 %v595, %v588
        %v598 = vadd.f32 %v569, %v596
        %v599 = vadd.f32 %v570, %v597
        %v600 = vperm.slane %v585, 0
        %v601 = vperm.slane %v586, 0
        %v602 = vmul.f32 %v600, %v590
        %v603 = vmul.f32 %v601, %v590
        %v604 = vadd.f32 %v575, %v602
        %v605 = vadd.f32 %v576, %v603
        %v606 = vperm.slane %v591, 0
        %v607 = vperm.slane %v592, 0
        %v608 = vmul.f32 %v606, %v593
        %v609 = vmul.f32 %v607, %v593
        %v610 = vadd.f32 %v581, %v608
        %v611 = vadd.f32 %v582, %v609
        %v612 = vsub.f32 %v598, %v604
        %v613 = vsub.f32 %v599, %v605
        %614 = vst [vmem:[%s491] sm:$0xff] %v612
        %615 = vst [vmem:[%s491 + $0x8] sm:$0xff] %v613
        %v616 = vsub.f32 %v610, %v598
        %v617 = vsub.f32 %v611, %v599
        %v618 = vsub.f32 %v616, %v604
        %v619 = vsub.f32 %v617, %v605
        %620 = vst [vmem:[%s497] sm:$0xff] %v618
        %621 = vst [vmem:[%s497 + $0x8] sm:$0xff] %v619
        %s622 = sand.u32 %s147, 1
        %s623 = sand.u32 %s147, 1
        %s624 = smul.addr %s623, 16
        %s625 = scalar_lea.vmem [#allocation6], %s624
        %s626 = sand.u32 %s175, 1
        %s627 = sand.u32 %s175, 1
        %s628 = smul.addr %s627, 16
        %s629 = scalar_lea.vmem [#allocation7], %s628
        // Predicated region
        $region195: #{spectral_conv3d.1} parent=177 // pred_check
          %p630 = pneg %p157
        $region196: #{spectral_conv3d.1} parent=177 // pred_check_branch
          %632 = sbr.rel (%p630) target = $region198
        $region197: #{spectral_conv3d.1} parent=177 // pred_region
          %s633 = smul.addr %s22, 2
          %s634 = sadd.s32 %s21, %s633
          %s635 = smul.addr %s634, 8
          %s636 = scalar_lea.vmem %s4, %s635
          // Predicated region
          $region199: #{spectral_conv3d.1} parent=197 // pred_check
            _
          $region200: #{spectral_conv3d.1} parent=197 // pred_check_branch
            %638 = sbr.rel (0) target = $region202
          $region201: #{spectral_conv3d.1} parent=197 // pred_region
            // Predicated region
            $region203: #{spectral_conv3d.1} parent=201 // pred_check
              _
            $region204: #{spectral_conv3d.1} parent=201 // pred_check_branch
              %640 = sbr.rel (0) target = $region206
            $region205: #{spectral_conv3d.1} parent=201 // pred_region
              // Predicated region
              $region218: #{spectral_conv3d.1} parent=205 // pred_check
                _
              $region219: #{spectral_conv3d.1} parent=205 // pred_check_branch
                %658 = sbr.rel (0) target = $region221
              $region220: #{spectral_conv3d.1} parent=205 // pred_region
                loop: start=0, step=1, limit=1
                $region222: #{spectral_conv3d.1} parent=220 // loop_pre_header
                  _
                $region223: #{spectral_conv3d.1} parent=220 // loop_header
                  %s660 = sphi 0, %s664
                  %p661 = scmp.ge.s32.totalorder %s660, 1
                  %s665 = sphi %s625, %s625
                  %s666 = sphi %s636, %s636
                $region224: #{spectral_conv3d.1} parent=220 // loop_header_branch
                  %663 = sbr.rel (%p661) target = $region228
                $region225: #{spectral_conv3d.1} parent=220 // loop_body
                  %v667 = vld [vmem:[%s665] sm:$0xff]
                  %668 = vst [vmem:[%s666] sm:$0xff] %v667
                  %v669 = vld [vmem:[%s665 + $0x8] sm:$0xff]
                  %670 = vst [vmem:[%s666 + $0x10] sm:$0xff] %v669
                $region226: #{spectral_conv3d.1} parent=220 // loop_footer
                  %s664 = sadd.s32 1, %s660
                $region227: #{spectral_conv3d.1} parent=220 // loop_footer_branch
                  %659 = sbr.rel target = $region223
                $region228: #{spectral_conv3d.1} parent=220 // loop_exit
                  _
              $region221: #{spectral_conv3d.1} parent=205 // pred_fallthru
                _
              // Predicated region
              $region229: #{spectral_conv3d.1} parent=205 // pred_check
                _
              $region230: #{spectral_conv3d.1} parent=205 // pred_check_branch
                %672 = sbr.rel target = $region232
              $region231: #{spectral_conv3d.1} parent=205 // pred_region
                _
              $region232: #{spectral_conv3d.1} parent=205 // pred_fallthru
                _
            $region206: #{spectral_conv3d.1} parent=201 // pred_fallthru
              _
            // Predicated region
            $region207: #{spectral_conv3d.1} parent=201 // pred_check
              _
            $region208: #{spectral_conv3d.1} parent=201 // pred_check_branch
              %642 = sbr.rel target = $region210
            $region209: #{spectral_conv3d.1} parent=201 // pred_region
              %s644 = ssub.s32 256, 1
              loop: start=0, step=1, limit=1
              $region211: #{spectral_conv3d.1} parent=209 // loop_pre_header
                _
              $region212: #{spectral_conv3d.1} parent=209 // loop_header
                %s646 = sphi 0, %s650
                %p647 = scmp.ge.s32.totalorder %s646, 1
                %s651 = sphi %s625, %s625
                %s652 = sphi %s636, %s636
              $region213: #{spectral_conv3d.1} parent=209 // loop_header_branch
                %649 = sbr.rel (%p647) target = $region217
              $region214: #{spectral_conv3d.1} parent=209 // loop_body
                %v653 = vld [vmem:[%s651] sm:%s644]
                %654 = vst [vmem:[%s652] sm:%s644] %v653
                %v655 = vld [vmem:[%s651 + $0x8] sm:%s644]
                %656 = vst [vmem:[%s652 + $0x10] sm:%s644] %v655
              $region215: #{spectral_conv3d.1} parent=209 // loop_footer
                %s650 = sadd.s32 1, %s646
              $region216: #{spectral_conv3d.1} parent=209 // loop_footer_branch
                %645 = sbr.rel target = $region212
              $region217: #{spectral_conv3d.1} parent=209 // loop_exit
                _
            $region210: #{spectral_conv3d.1} parent=201 // pred_fallthru
              _
          $region202: #{spectral_conv3d.1} parent=197 // pred_fallthru
            _
          %673 = vnop
        $region198: #{spectral_conv3d.1} parent=177 // pred_fallthru
          _
        // Predicated region
        $region233: #{spectral_conv3d.1} parent=177 // pred_check
          %p674 = pneg %p185
        $region234: #{spectral_conv3d.1} parent=177 // pred_check_branch
          %676 = sbr.rel (%p674) target = $region236
        $region235: #{spectral_conv3d.1} parent=177 // pred_region
          %s677 = smul.addr %s22, 2
          %s678 = sadd.s32 %s21, %s677
          %s679 = smul.addr %s678, 8
          %s680 = scalar_lea.vmem %s5, %s679
          // Predicated region
          $region237: #{spectral_conv3d.1} parent=235 // pred_check
            _
          $region238: #{spectral_conv3d.1} parent=235 // pred_check_branch
            %682 = sbr.rel (0) target = $region240
          $region239: #{spectral_conv3d.1} parent=235 // pred_region
            // Predicated region
            $region241: #{spectral_conv3d.1} parent=239 // pred_check
              _
            $region242: #{spectral_conv3d.1} parent=239 // pred_check_branch
              %684 = sbr.rel (0) target = $region244
            $region243: #{spectral_conv3d.1} parent=239 // pred_region
              // Predicated region
              $region256: #{spectral_conv3d.1} parent=243 // pred_check
                _
              $region257: #{spectral_conv3d.1} parent=243 // pred_check_branch
                %702 = sbr.rel (0) target = $region259
              $region258: #{spectral_conv3d.1} parent=243 // pred_region
                loop: start=0, step=1, limit=1
                $region260: #{spectral_conv3d.1} parent=258 // loop_pre_header
                  _
                $region261: #{spectral_conv3d.1} parent=258 // loop_header
                  %s704 = sphi 0, %s708
                  %p705 = scmp.ge.s32.totalorder %s704, 1
                  %s709 = sphi %s629, %s629
                  %s710 = sphi %s680, %s680
                $region262: #{spectral_conv3d.1} parent=258 // loop_header_branch
                  %707 = sbr.rel (%p705) target = $region266
                $region263: #{spectral_conv3d.1} parent=258 // loop_body
                  %v711 = vld [vmem:[%s709] sm:$0xff]
                  %712 = vst [vmem:[%s710] sm:$0xff] %v711
                  %v713 = vld [vmem:[%s709 + $0x8] sm:$0xff]
                  %714 = vst [vmem:[%s710 + $0x10] sm:$0xff] %v713
                $region264: #{spectral_conv3d.1} parent=258 // loop_footer
                  %s708 = sadd.s32 1, %s704
                $region265: #{spectral_conv3d.1} parent=258 // loop_footer_branch
                  %703 = sbr.rel target = $region261
                $region266: #{spectral_conv3d.1} parent=258 // loop_exit
                  _
              $region259: #{spectral_conv3d.1} parent=243 // pred_fallthru
                _
              // Predicated region
              $region267: #{spectral_conv3d.1} parent=243 // pred_check
                _
              $region268: #{spectral_conv3d.1} parent=243 // pred_check_branch
                %716 = sbr.rel target = $region270
              $region269: #{spectral_conv3d.1} parent=243 // pred_region
                _
              $region270: #{spectral_conv3d.1} parent=243 // pred_fallthru
                _
            $region244: #{spectral_conv3d.1} parent=239 // pred_fallthru
              _
            // Predicated region
            $region245: #{spectral_conv3d.1} parent=239 // pred_check
              _
            $region246: #{spectral_conv3d.1} parent=239 // pred_check_branch
              %686 = sbr.rel target = $region248
            $region247: #{spectral_conv3d.1} parent=239 // pred_region
              %s688 = ssub.s32 256, 1
              loop: start=0, step=1, limit=1
              $region249: #{spectral_conv3d.1} parent=247 // loop_pre_header
                _
              $region250: #{spectral_conv3d.1} parent=247 // loop_header
                %s690 = sphi 0, %s694
                %p691 = scmp.ge.s32.totalorder %s690, 1
                %s695 = sphi %s629, %s629
                %s696 = sphi %s680, %s680
              $region251: #{spectral_conv3d.1} parent=247 // loop_header_branch
                %693 = sbr.rel (%p691) target = $region255
              $region252: #{spectral_conv3d.1} parent=247 // loop_body
                %v697 = vld [vmem:[%s695] sm:%s688]
                %698 = vst [vmem:[%s696] sm:%s688] %v697
                %v699 = vld [vmem:[%s695 + $0x8] sm:%s688]
                %700 = vst [vmem:[%s696 + $0x10] sm:%s688] %v699
              $region253: #{spectral_conv3d.1} parent=247 // loop_footer
                %s694 = sadd.s32 1, %s690
              $region254: #{spectral_conv3d.1} parent=247 // loop_footer_branch
                %689 = sbr.rel target = $region250
              $region255: #{spectral_conv3d.1} parent=247 // loop_exit
                _
            $region248: #{spectral_conv3d.1} parent=239 // pred_fallthru
              _
          $region240: #{spectral_conv3d.1} parent=235 // pred_fallthru
            _
          %717 = vnop
        $region236: #{spectral_conv3d.1} parent=177 // pred_fallthru
          _
      $region178: #{spectral_conv3d.1} parent=5 // pred_fallthru
        _
      %p718 = scmp.le.s32.totalorder 2, %s12
      // Predicated region
      $region271: #{spectral_conv3d.1} parent=5 // pred_check
        %p719 = pneg %p718
      $region272: #{spectral_conv3d.1} parent=5 // pred_check_branch
        %721 = sbr.rel (%p719) target = $region274
      $region273: #{spectral_conv3d.1} parent=5 // pred_region
        %s722 = ssub.s32 %s12, 2
        // Predicated region
        $region275: #{spectral_conv3d.1} parent=273 // pred_check
          %p723 = pneg %p163
        $region276: #{spectral_conv3d.1} parent=273 // pred_check_branch
          %725 = sbr.rel (%p723) target = $region278
        $region277: #{spectral_conv3d.1} parent=273 // pred_region
          %s726 = sand.u32 %s148, 1
          %s727 = sand.u32 %s148, 1
          %s728 = smul.addr %s727, 16
          %s729 = scalar_lea.vmem [#allocation6], %s728
        $region278: #{spectral_conv3d.1} parent=273 // pred_fallthru
          _
        // Predicated region
        $region279: #{spectral_conv3d.1} parent=273 // pred_check
          %p730 = pneg %p191
        $region280: #{spectral_conv3d.1} parent=273 // pred_check_branch
          %732 = sbr.rel (%p730) target = $region282
        $region281: #{spectral_conv3d.1} parent=273 // pred_region
          %s733 = sand.u32 %s176, 1
          %s734 = sand.u32 %s176, 1
          %s735 = smul.addr %s734, 16
          %s736 = scalar_lea.vmem [#allocation7], %s735
        $region282: #{spectral_conv3d.1} parent=273 // pred_fallthru
          _
      $region274: #{spectral_conv3d.1} parent=5 // pred_fallthru
        _
    $region6: #{spectral_conv3d.1} parent=1 // loop_footer
      %s16 = sadd.s32 1, %s12
    $region7: #{spectral_conv3d.1} parent=1 // loop_footer_branch
      %11 = sbr.rel target = $region3
    $region8: #{spectral_conv3d.1} parent=1 // loop_exit
      _

// kernel: reverse.1
$region0: #{reverse.1}
  #allocation0 [shape = 's32[1]{0}', space=sflag, size = 0x4, scoped, tag = 'scoped memory for reverse.1']
  %s0 = inlined_call_operand.vmem [shape: f32[2,8,16,16,7], index: 0, kind: input, shape index: {}]
  %s1 = inlined_call_operand.vmem [shape: f32[2,8,16,16,7], index: 1, kind: output, shape index: {}]
  %s2 = scalar_lea.vmem %s0, 96
  %v3 = vld [vmem:[%s2] sm:$0xff]
  %4 = vst [vmem:[%s1] sm:$0xff] %v3
  %s5 = scalar_lea.vmem %s0, 992
  %v6 = vld [vmem:[%s5] sm:$0xff]
  %s7 = scalar_lea.vmem %s1, 896
  %8 = vst [vmem:[%s7] sm:$0xff] %v6
  %s9 = scalar_lea.vmem %s0, 208
  %v10 = vld [vmem:[%s9] sm:$0xff]
  %s11 = scalar_lea.vmem %s1, 112
  %12 = vst [vmem:[%s11] sm:$0xff] %v10
  %s13 = scalar_lea.vmem %s0, 1104
  %v14 = vld [vmem:[%s13] sm:$0xff]
  %s15 = scalar_lea.vmem %s1, 1008
  %16 = vst [vmem:[%s15] sm:$0xff] %v14
  %s17 = scalar_lea.vmem %s0, 320
  %v18 = vld [vmem:[%s17] sm:$0xff]
  %s19 = scalar_lea.vmem %s1, 224
  %20 = vst [vmem:[%s19] sm:$0xff] %v18
  %s21 = scalar_lea.vmem %s0, 1216
  %v22 = vld [vmem:[%s21] sm:$0xff]
  %s23 = scalar_lea.vmem %s1, 1120
  %24 = vst [vmem:[%s23] sm:$0xff] %v22
  %s25 = scalar_lea.vmem %s0, 432
  %v26 = vld [vmem:[%s25] sm:$0xff]
  %s27 = scalar_lea.vmem %s1, 336
  %28 = vst [vmem:[%s27] sm:$0xff] %v26
  %s29 = scalar_lea.vmem %s0, 1328
  %v30 = vld [vmem:[%s29] sm:$0xff]
  %s31 = scalar_lea.vmem %s1, 1232
  %32 = vst [vmem:[%s31] sm:$0xff] %v30
  %s33 = scalar_lea.vmem %s0, 544
  %v34 = vld [vmem:[%s33] sm:$0xff]
  %s35 = scalar_lea.vmem %s1, 448
  %36 = vst [vmem:[%s35] sm:$0xff] %v34
  %s37 = scalar_lea.vmem %s0, 1440
  %v38 = vld [vmem:[%s37] sm:$0xff]
  %s39 = scalar_lea.vmem %s1, 1344
  %40 = vst [vmem:[%s39] sm:$0xff] %v38
  %s41 = scalar_lea.vmem %s0, 656
  %v42 = vld [vmem:[%s41] sm:$0xff]
  %s43 = scalar_lea.vmem %s1, 560
  %44 = vst [vmem:[%s43] sm:$0xff] %v42
  %s45 = scalar_lea.vmem %s0, 1552
  %v46 = vld [vmem:[%s45] sm:$0xff]
  %s47 = scalar_lea.vmem %s1, 1456
  %48 = vst [vmem:[%s47] sm:$0xff] %v46
  %s49 = scalar_lea.vmem %s0, 768
  %v50 = vld [vmem:[%s49] sm:$0xff]
  %s51 = scalar_lea.vmem %s1, 672
  %52 = vst [vmem:[%s51] sm:$0xff] %v50
  %s53 = scalar_lea.vmem %s0, 1664
  %v54 = vld [vmem:[%s53] sm:$0xff]
  %s55 = scalar_lea.vmem %s1, 1568
  %56 = vst [vmem:[%s55] sm:$0xff] %v54
  %s57 = scalar_lea.vmem %s0, 880
  %v58 = vld [vmem:[%s57] sm:$0xff]
  %s59 = scalar_lea.vmem %s1, 784
  %60 = vst [vmem:[%s59] sm:$0xff] %v58
  %s61 = scalar_lea.vmem %s0, 1776
  %v62 = vld [vmem:[%s61] sm:$0xff]
  %s63 = scalar_lea.vmem %s1, 1680
  %64 = vst [vmem:[%s63] sm:$0xff] %v62
  %s65 = scalar_lea.vmem %s0, 80
  %v66 = vld [vmem:[%s65] sm:$0xff]
  %s67 = scalar_lea.vmem %s1, 16
  %68 = vst [vmem:[%s67] sm:$0xff] %v66
  %s69 = scalar_lea.vmem %s0, 976
  %v70 = vld [vmem:[%s69] sm:$0xff]
  %s71 = scalar_lea.vmem %s1, 912
  %72 = vst [vmem:[%s71] sm:$0xff] %v70
  %s73 = scalar_lea.vmem %s0, 192
  %v74 = vld [vmem:[%s73] sm:$0xff]
  %s75 = scalar_lea.vmem %s1, 128
  %76 = vst [vmem:[%s75] sm:$0xff] %v74
  %s77 = scalar_lea.vmem %s0, 1088
  %v78 = vld [vmem:[%s77] sm:$0xff]
  %s79 = scalar_lea.vmem %s1, 1024
  %80 = vst [vmem:[%s79] sm:$0xff] %v78
  %s81 = scalar_lea.vmem %s0, 304
  %v82 = vld [vmem:[%s81] sm:$0xff]
  %s83 = scalar_lea.vmem %s1, 240
  %84 = vst [vmem:[%s83] sm:$0xff] %v82
  %s85 = scalar_lea.vmem %s0, 1200
  %v86 = vld [vmem:[%s85] sm:$0xff]
  %s87 = scalar_lea.vmem %s1, 1136
  %88 = vst [vmem:[%s87] sm:$0xff] %v86
  %s89 = scalar_lea.vmem %s0, 416
  %v90 = vld [vmem:[%s89] sm:$0xff]
  %s91 = scalar_lea.vmem %s1, 352
  %92 = vst [vmem:[%s91] sm:$0xff] %v90
  %s93 = scalar_lea.vmem %s0, 1312
  %v94 = vld [vmem:[%s93] sm:$0xff]
  %s95 = scalar_lea.vmem %s1, 1248
  %96 = vst [vmem:[%s95] sm:$0xff] %v94
  %s97 = scalar_lea.vmem %s0, 528
  %v98 = vld [vmem:[%s97] sm:$0xff]
  %s99 = scalar_lea.vmem %s1, 464
  %100 = vst [vmem:[%s99] sm:$0xff] %v98
  %s101 = scalar_lea.vmem %s0, 1424
  %v102 = vld [vmem:[%s101] sm:$0xff]
  %s103 = scalar_lea.vmem %s1, 1360
  %104 = vst [vmem:[%s103] sm:$0xff] %v102
  %s105 = scalar_lea.vmem %s0, 640
  %v106 = vld [vmem:[%s105] sm:$0xff]
  %s107 = scalar_lea.vmem %s1, 576
  %108 = vst [vmem:[%s107] sm:$0xff] %v106
  %s109 = scalar_lea.vmem %s0, 1536
  %v110 = vld [vmem:[%s109] sm:$0xff]
  %s111 = scalar_lea.vmem %s1, 1472
  %112 = vst [vmem:[%s111] sm:$0xff] %v110
  %s113 = scalar_lea.vmem %s0, 752
  %v114 = vld [vmem:[%s113] sm:$0xff]
  %s115 = scalar_lea.vmem %s1, 688
  %116 = vst [vmem:[%s115] sm:$0xff] %v114
  %s117 = scalar_lea.vmem %s0, 1648
  %v118 = vld [vmem:[%s117] sm:$0xff]
  %s119 = scalar_lea.vmem %s1, 1584
  %120 = vst [vmem:[%s119] sm:$0xff] %v118
  %s121 = scalar_lea.vmem %s0, 864
  %v122 = vld [vmem:[%s121] sm:$0xff]
  %s123 = scalar_lea.vmem %s1, 800
  %124 = vst [vmem:[%s123] sm:$0xff] %v122
  %s125 = scalar_lea.vmem %s0, 1760
  %v126 = vld [vmem:[%s125] sm:$0xff]
  %s127 = scalar_lea.vmem %s1, 1696
  %128 = vst [vmem:[%s127] sm:$0xff] %v126
  %s129 = scalar_lea.vmem %s0, 64
  %v130 = vld [vmem:[%s129] sm:$0xff]
  %s131 = scalar_lea.vmem %s1, 32
  %132 = vst [vmem:[%s131] sm:$0xff] %v130
  %s133 = scalar_lea.vmem %s0, 960
  %v134 = vld [vmem:[%s133] sm:$0xff]
  %s135 = scalar_lea.vmem %s1, 928
  %136 = vst [vmem:[%s135] sm:$0xff] %v134
  %s137 = scalar_lea.vmem %s0, 176
  %v138 = vld [vmem:[%s137] sm:$0xff]
  %s139 = scalar_lea.vmem %s1, 144
  %140 = vst [vmem:[%s139] sm:$0xff] %v138
  %s141 = scalar_lea.vmem %s0, 1072
  %v142 = vld [vmem:[%s141] sm:$0xff]
  %s143 = scalar_lea.vmem %s1, 1040
  %144 = vst [vmem:[%s143] sm:$0xff] %v142
  %s145 = scalar_lea.vmem %s0, 288
  %v146 = vld [vmem:[%s145] sm:$0xff]
  %s147 = scalar_lea.vmem %s1, 256
  %148 = vst [vmem:[%s147] sm:$0xff] %v146
  %s149 = scalar_lea.vmem %s0, 1184
  %v150 = vld [vmem:[%s149] sm:$0xff]
  %s151 = scalar_lea.vmem %s1, 1152
  %152 = vst [vmem:[%s151] sm:$0xff] %v150
  %s153 = scalar_lea.vmem %s0, 400
  %v154 = vld [vmem:[%s153] sm:$0xff]
  %s155 = scalar_lea.vmem %s1, 368
  %156 = vst [vmem:[%s155] sm:$0xff] %v154
  %s157 = scalar_lea.vmem %s0, 1296
  %v158 = vld [vmem:[%s157] sm:$0xff]
  %s159 = scalar_lea.vmem %s1, 1264
  %160 = vst [vmem:[%s159] sm:$0xff] %v158
  %s161 = scalar_lea.vmem %s0, 512
  %v162 = vld [vmem:[%s161] sm:$0xff]
  %s163 = scalar_lea.vmem %s1, 480
  %164 = vst [vmem:[%s163] sm:$0xff] %v162
  %s165 = scalar_lea.vmem %s0, 1408
  %v166 = vld [vmem:[%s165] sm:$0xff]
  %s167 = scalar_lea.vmem %s1, 1376
  %168 = vst [vmem:[%s167] sm:$0xff] %v166
  %s169 = scalar_lea.vmem %s0, 624
  %v170 = vld [vmem:[%s169] sm:$0xff]
  %s171 = scalar_lea.vmem %s1, 592
  %172 = vst [vmem:[%s171] sm:$0xff] %v170
  %s173 = scalar_lea.vmem %s0, 1520
  %v174 = vld [vmem:[%s173] sm:$0xff]
  %s175 = scalar_lea.vmem %s1, 1488
  %176 = vst [vmem:[%s175] sm:$0xff] %v174
  %s177 = scalar_lea.vmem %s0, 736
  %v178 = vld [vmem:[%s177] sm:$0xff]
  %s179 = scalar_lea.vmem %s1, 704
  %180 = vst [vmem:[%s179] sm:$0xff] %v178
  %s181 = scalar_lea.vmem %s0, 1632
  %v182 = vld [vmem:[%s181] sm:$0xff]
  %s183 = scalar_lea.vmem %s1, 1600
  %184 = vst [vmem:[%s183] sm:$0xff] %v182
  %s185 = scalar_lea.vmem %s0, 848
  %v186 = vld [vmem:[%s185] sm:$0xff]
  %s187 = scalar_lea.vmem %s1, 816
  %188 = vst [vmem:[%s187] sm:$0xff] %v186
  %s189 = scalar_lea.vmem %s0, 1744
  %v190 = vld [vmem:[%s189] sm:$0xff]
  %s191 = scalar_lea.vmem %s1, 1712
  %192 = vst [vmem:[%s191] sm:$0xff] %v190
  %s193 = scalar_lea.vmem %s0, 48
  %v194 = vld [vmem:[%s193] sm:$0xff]
  %s195 = scalar_lea.vmem %s1, 48
  %196 = vst [vmem:[%s195] sm:$0xff] %v194
  %s197 = scalar_lea.vmem %s0, 944
  %v198 = vld [vmem:[%s197] sm:$0xff]
  %s199 = scalar_lea.vmem %s1, 944
  %200 = vst [vmem:[%s199] sm:$0xff] %v198
  %s201 = scalar_lea.vmem %s0, 160
  %v202 = vld [vmem:[%s201] sm:$0xff]
  %s203 = scalar_lea.vmem %s1, 160
  %204 = vst [vmem:[%s203] sm:$0xff] %v202
  %s205 = scalar_lea.vmem %s0, 1056
  %v206 = vld [vmem:[%s205] sm:$0xff]
  %s207 = scalar_lea.vmem %s1, 1056
  %208 = vst [vmem:[%s207] sm:$0xff] %v206
  %s209 = scalar_lea.vmem %s0, 272
  %v210 = vld [vmem:[%s209] sm:$0xff]
  %s211 = scalar_lea.vmem %s1, 272
  %212 = vst [vmem:[%s211] sm:$0xff] %v210
  %s213 = scalar_lea.vmem %s0, 1168
  %v214 = vld [vmem:[%s213] sm:$0xff]
  %s215 = scalar_lea.vmem %s1, 1168
  %216 = vst [vmem:[%s215] sm:$0xff] %v214
  %s217 = scalar_lea.vmem %s0, 384
  %v218 = vld [vmem:[%s217] sm:$0xff]
  %s219 = scalar_lea.vmem %s1, 384
  %220 = vst [vmem:[%s219] sm:$0xff] %v218
  %s221 = scalar_lea.vmem %s0, 1280
  %v222 = vld [vmem:[%s221] sm:$0xff]
  %s223 = scalar_lea.vmem %s1, 1280
  %224 = vst [vmem:[%s223] sm:$0xff] %v222
  %s225 = scalar_lea.vmem %s0, 496
  %v226 = vld [vmem:[%s225] sm:$0xff]
  %s227 = scalar_lea.vmem %s1, 496
  %228 = vst [vmem:[%s227] sm:$0xff] %v226
  %s229 = scalar_lea.vmem %s0, 1392
  %v230 = vld [vmem:[%s229] sm:$0xff]
  %s231 = scalar_lea.vmem %s1, 1392
  %232 = vst [vmem:[%s231] sm:$0xff] %v230
  %s233 = scalar_lea.vmem %s0, 608
  %v234 = vld [vmem:[%s233] sm:$0xff]
  %s235 = scalar_lea.vmem %s1, 608
  %236 = vst [vmem:[%s235] sm:$0xff] %v234
  %s237 = scalar_lea.vmem %s0, 1504
  %v238 = vld [vmem:[%s237] sm:$0xff]
  %s239 = scalar_lea.vmem %s1, 1504
  %240 = vst [vmem:[%s239] sm:$0xff] %v238
  %s241 = scalar_lea.vmem %s0, 720
  %v242 = vld [vmem:[%s241] sm:$0xff]
  %s243 = scalar_lea.vmem %s1, 720
  %244 = vst [vmem:[%s243] sm:$0xff] %v242
  %s245 = scalar_lea.vmem %s0, 1616
  %v246 = vld [vmem:[%s245] sm:$0xff]
  %s247 = scalar_lea.vmem %s1, 1616
  %248 = vst [vmem:[%s247] sm:$0xff] %v246
  %s249 = scalar_lea.vmem %s0, 832
  %v250 = vld [vmem:[%s249] sm:$0xff]
  %s251 = scalar_lea.vmem %s1, 832
  %252 = vst [vmem:[%s251] sm:$0xff] %v250
  %s253 = scalar_lea.vmem %s0, 1728
  %v254 = vld [vmem:[%s253] sm:$0xff]
  %s255 = scalar_lea.vmem %s1, 1728
  %256 = vst [vmem:[%s255] sm:$0xff] %v254
  %s257 = scalar_lea.vmem %s0, 32
  %v258 = vld [vmem:[%s257] sm:$0xff]
  %s259 = scalar_lea.vmem %s1, 64
  %260 = vst [vmem:[%s259] sm:$0xff] %v258
  %s261 = scalar_lea.vmem %s0, 928
  %v262 = vld [vmem:[%s261] sm:$0xff]
  %s263 = scalar_lea.vmem %s1, 960
  %264 = vst [vmem:[%s263] sm:$0xff] %v262
  %s265 = scalar_lea.vmem %s0, 144
  %v266 = vld [vmem:[%s265] sm:$0xff]
  %s267 = scalar_lea.vmem %s1, 176
  %268 = vst [vmem:[%s267] sm:$0xff] %v266
  %s269 = scalar_lea.vmem %s0, 1040
  %v270 = vld [vmem:[%s269] sm:$0xff]
  %s271 = scalar_lea.vmem %s1, 1072
  %272 = vst [vmem:[%s271] sm:$0xff] %v270
  %s273 = scalar_lea.vmem %s0, 256
  %v274 = vld [vmem:[%s273] sm:$0xff]
  %s275 = scalar_lea.vmem %s1, 288
  %276 = vst [vmem:[%s275] sm:$0xff] %v274
  %s277 = scalar_lea.vmem %s0, 1152
  %v278 = vld [vmem:[%s277] sm:$0xff]
  %s279 = scalar_lea.vmem %s1, 1184
  %280 = vst [vmem:[%s279] sm:$0xff] %v278
  %s281 = scalar_lea.vmem %s0, 368
  %v282 = vld [vmem:[%s281] sm:$0xff]
  %s283 = scalar_lea.vmem %s1, 400
  %284 = vst [vmem:[%s283] sm:$0xff] %v282
  %s285 = scalar_lea.vmem %s0, 1264
  %v286 = vld [vmem:[%s285] sm:$0xff]
  %s287 = scalar_lea.vmem %s1, 1296
  %288 = vst [vmem:[%s287] sm:$0xff] %v286
  %s289 = scalar_lea.vmem %s0, 480
  %v290 = vld [vmem:[%s289] sm:$0xff]
  %s291 = scalar_lea.vmem %s1, 512
  %292 = vst [vmem:[%s291] sm:$0xff] %v290
  %s293 = scalar_lea.vmem %s0, 1376
  %v294 = vld [vmem:[%s293] sm:$0xff]
  %s295 = scalar_lea.vmem %s1, 1408
  %296 = vst [vmem:[%s295] sm:$0xff] %v294
  %s297 = scalar_lea.vmem %s0, 592
  %v298 = vld [vmem:[%s297] sm:$0xff]
  %s299 = scalar_lea.vmem %s1, 624
  %300 = vst [vmem:[%s299] sm:$0xff] %v298
  %s301 = scalar_lea.vmem %s0, 1488
  %v302 = vld [vmem:[%s301] sm:$0xff]
  %s303 = scalar_lea.vmem %s1, 1520
  %304 = vst [vmem:[%s303] sm:$0xff] %v302
  %s305 = scalar_lea.vmem %s0, 704
  %v306 = vld [vmem:[%s305] sm:$0xff]
  %s307 = scalar_lea.vmem %s1, 736
  %308 = vst [vmem:[%s307] sm:$0xff] %v306
  %s309 = scalar_lea.vmem %s0, 1600
  %v310 = vld [vmem:[%s309] sm:$0xff]
  %s311 = scalar_lea.vmem %s1, 1632
  %312 = vst [vmem:[%s311] sm:$0xff] %v310
  %s313 = scalar_lea.vmem %s0, 816
  %v314 = vld [vmem:[%s313] sm:$0xff]
  %s315 = scalar_lea.vmem %s1, 848
  %316 = vst [vmem:[%s315] sm:$0xff] %v314
  %s317 = scalar_lea.vmem %s0, 1712
  %v318 = vld [vmem:[%s317] sm:$0xff]
  %s319 = scalar_lea.vmem %s1, 1744
  %320 = vst [vmem:[%s319] sm:$0xff] %v318
  %s321 = scalar_lea.vmem %s0, 16
  %v322 = vld [vmem:[%s321] sm:$0xff]
  %s323 = scalar_lea.vmem %s1, 80
  %324 = vst [vmem:[%s323] sm:$0xff] %v322
  %s325 = scalar_lea.vmem %s0, 912
  %v326 = vld [vmem:[%s325] sm:$0xff]
  %s327 = scalar_lea.vmem %s1, 976
  %328 = vst [vmem:[%s327] sm:$0xff] %v326
  %s329 = scalar_lea.vmem %s0, 128
  %v330 = vld [vmem:[%s329] sm:$0xff]
  %s331 = scalar_lea.vmem %s1, 192
  %332 = vst [vmem:[%s331] sm:$0xff] %v330
  %s333 = scalar_lea.vmem %s0, 1024
  %v334 = vld [vmem:[%s333] sm:$0xff]
  %s335 = scalar_lea.vmem %s1, 1088
  %336 = vst [vmem:[%s335] sm:$0xff] %v334
  %s337 = scalar_lea.vmem %s0, 240
  %v338 = vld [vmem:[%s337] sm:$0xff]
  %s339 = scalar_lea.vmem %s1, 304
  %340 = vst [vmem:[%s339] sm:$0xff] %v338
  %s341 = scalar_lea.vmem %s0, 1136
  %v342 = vld [vmem:[%s341] sm:$0xff]
  %s343 = scalar_lea.vmem %s1, 1200
  %344 = vst [vmem:[%s343] sm:$0xff] %v342
  %s345 = scalar_lea.vmem %s0, 352
  %v346 = vld [vmem:[%s345] sm:$0xff]
  %s347 = scalar_lea.vmem %s1, 416
  %348 = vst [vmem:[%s347] sm:$0xff] %v346
  %s349 = scalar_lea.vmem %s0, 1248
  %v350 = vld [vmem:[%s349] sm:$0xff]
  %s351 = scalar_lea.vmem %s1, 1312
  %352 = vst [vmem:[%s351] sm:$0xff] %v350
  %s353 = scalar_lea.vmem %s0, 464
  %v354 = vld [vmem:[%s353] sm:$0xff]
  %s355 = scalar_lea.vmem %s1, 528
  %356 = vst [vmem:[%s355] sm:$0xff] %v354
  %s357 = scalar_lea.vmem %s0, 1360
  %v358 = vld [vmem:[%s357] sm:$0xff]
  %s359 = scalar_lea.vmem %s1, 1424
  %360 = vst [vmem:[%s359] sm:$0xff] %v358
  %s361 = scalar_lea.vmem %s0, 576
  %v362 = vld [vmem:[%s361] sm:$0xff]
  %s363 = scalar_lea.vmem %s1, 640
  %364 = vst [vmem:[%s363] sm:$0xff] %v362
  %s365 = scalar_lea.vmem %s0, 1472
  %v366 = vld [vmem:[%s365] sm:$0xff]
  %s367 = scalar_lea.vmem %s1, 1536
  %368 = vst [vmem:[%s367] sm:$0xff] %v366
  %s369 = scalar_lea.vmem %s0, 688
  %v370 = vld [vmem:[%s369] sm:$0xff]
  %s371 = scalar_lea.vmem %s1, 752
  %372 = vst [vmem:[%s371] sm:$0xff] %v370
  %s373 = scalar_lea.vmem %s0, 1584
  %v374 = vld [vmem:[%s373] sm:$0xff]
  %s375 = scalar_lea.vmem %s1, 1648
  %376 = vst [vmem:[%s375] sm:$0xff] %v374
  %s377 = scalar_lea.vmem %s0, 800
  %v378 = vld [vmem:[%s377] sm:$0xff]
  %s379 = scalar_lea.vmem %s1, 864
  %380 = vst [vmem:[%s379] sm:$0xff] %v378
  %s381 = scalar_lea.vmem %s0, 1696
  %v382 = vld [vmem:[%s381] sm:$0xff]
  %s383 = scalar_lea.vmem %s1, 1760
  %384 = vst [vmem:[%s383] sm:$0xff] %v382
  %v385 = vld [vmem:[%s0] sm:$0xff]
  %s386 = scalar_lea.vmem %s1, 96
  %387 = vst [vmem:[%s386] sm:$0xff] %v385
  %s388 = scalar_lea.vmem %s0, 896
  %v389 = vld [vmem:[%s388] sm:$0xff]
  %s390 = scalar_lea.vmem %s1, 992
  %391 = vst [vmem:[%s390] sm:$0xff] %v389
  %s392 = scalar_lea.vmem %s0, 112
  %v393 = vld [vmem:[%s392] sm:$0xff]
  %s394 = scalar_lea.vmem %s1, 208
  %395 = vst [vmem:[%s394] sm:$0xff] %v393
  %s396 = scalar_lea.vmem %s0, 1008
  %v397 = vld [vmem:[%s396] sm:$0xff]
  %s398 = scalar_lea.vmem %s1, 1104
  %399 = vst [vmem:[%s398] sm:$0xff] %v397
  %s400 = scalar_lea.vmem %s0, 224
  %v401 = vld [vmem:[%s400] sm:$0xff]
  %s402 = scalar_lea.vmem %s1, 320
  %403 = vst [vmem:[%s402] sm:$0xff] %v401
  %s404 = scalar_lea.vmem %s0, 1120
  %v405 = vld [vmem:[%s404] sm:$0xff]
  %s406 = scalar_lea.vmem %s1, 1216
  %407 = vst [vmem:[%s406] sm:$0xff] %v405
  %s408 = scalar_lea.vmem %s0, 336
  %v409 = vld [vmem:[%s408] sm:$0xff]
  %s410 = scalar_lea.vmem %s1, 432
  %411 = vst [vmem:[%s410] sm:$0xff] %v409
  %s412 = scalar_lea.vmem %s0, 1232
  %v413 = vld [vmem:[%s412] sm:$0xff]
  %s414 = scalar_lea.vmem %s1, 1328
  %415 = vst [vmem:[%s414] sm:$0xff] %v413
  %s416 = scalar_lea.vmem %s0, 448
  %v417 = vld [vmem:[%s416] sm:$0xff]
  %s418 = scalar_lea.vmem %s1, 544
  %419 = vst [vmem:[%s418] sm:$0xff] %v417
  %s420 = scalar_lea.vmem %s0, 1344
  %v421 = vld [vmem:[%s420] sm:$0xff]
  %s422 = scalar_lea.vmem %s1, 1440
  %423 = vst [vmem:[%s422] sm:$0xff] %v421
  %s424 = scalar_lea.vmem %s0, 560
  %v425 = vld [vmem:[%s424] sm:$0xff]
  %s426 = scalar_lea.vmem %s1, 656
  %427 = vst [vmem:[%s426] sm:$0xff] %v425
  %s428 = scalar_lea.vmem %s0, 1456
  %v429 = vld [vmem:[%s428] sm:$0xff]
  %s430 = scalar_lea.vmem %s1, 1552
  %431 = vst [vmem:[%s430] sm:$0xff] %v429
  %s432 = scalar_lea.vmem %s0, 672
  %v433 = vld [vmem:[%s432] sm:$0xff]
  %s434 = scalar_lea.vmem %s1, 768
  %435 = vst [vmem:[%s434] sm:$0xff] %v433
  %s436 = scalar_lea.vmem %s0, 1568
  %v437 = vld [vmem:[%s436] sm:$0xff]
  %s438 = scalar_lea.vmem %s1, 1664
  %439 = vst [vmem:[%s438] sm:$0xff] %v437
  %s440 = scalar_lea.vmem %s0, 784
  %v441 = vld [vmem:[%s440] sm:$0xff]
  %s442 = scalar_lea.vmem %s1, 880
  %443 = vst [vmem:[%s442] sm:$0xff] %v441
  %s444 = scalar_lea.vmem %s0, 1680
  %v445 = vld [vmem:[%s444] sm:$0xff]
  %s446 = scalar_lea.vmem %s1, 1776
  %447 = vst [vmem:[%s446] sm:$0xff] %v445
  %s448 = scalar_lea.vmem %s0, 104
  %v449 = vld [vmem:[%s448] sm:$0xff]
  %s450 = scalar_lea.vmem %s1, 8
  %451 = vst [vmem:[%s450] sm:$0xff] %v449
  %s452 = scalar_lea.vmem %s0, 1000
  %v453 = vld [vmem:[%s452] sm:$0xff]
  %s454 = scalar_lea.vmem %s1, 904
  %455 = vst [vmem:[%s454] sm:$0xff] %v453
  %s456 = scalar_lea.vmem %s0, 216
  %v457 = vld [vmem:[%s456] sm:$0xff]
  %s458 = scalar_lea.vmem %s1, 120
  %459 = vst [vmem:[%s458] sm:$0xff] %v457
  %s460 = scalar_lea.vmem %s0, 1112
  %v461 = vld [vmem:[%s460] sm:$0xff]
  %s462 = scalar_lea.vmem %s1, 1016
  %463 = vst [vmem:[%s462] sm:$0xff] %v461
  %s464 = scalar_lea.vmem %s0, 328
  %v465 = vld [vmem:[%s464] sm:$0xff]
  %s466 = scalar_lea.vmem %s1, 232
  %467 = vst [vmem:[%s466] sm:$0xff] %v465
  %s468 = scalar_lea.vmem %s0, 1224
  %v469 = vld [vmem:[%s468] sm:$0xff]
  %s470 = scalar_lea.vmem %s1, 1128
  %471 = vst [vmem:[%s470] sm:$0xff] %v469
  %s472 = scalar_lea.vmem %s0, 440
  %v473 = vld [vmem:[%s472] sm:$0xff]
  %s474 = scalar_lea.vmem %s1, 344
  %475 = vst [vmem:[%s474] sm:$0xff] %v473
  %s476 = scalar_lea.vmem %s0, 1336
  %v477 = vld [vmem:[%s476] sm:$0xff]
  %s478 = scalar_lea.vmem %s1, 1240
  %479 = vst [vmem:[%s478] sm:$0xff] %v477
  %s480 = scalar_lea.vmem %s0, 552
  %v481 = vld [vmem:[%s480] sm:$0xff]
  %s482 = scalar_lea.vmem %s1, 456
  %483 = vst [vmem:[%s482] sm:$0xff] %v481
  %s484 = scalar_lea.vmem %s0, 1448
  %v485 = vld [vmem:[%s484] sm:$0xff]
  %s486 = scalar_lea.vmem %s1, 1352
  %487 = vst [vmem:[%s486] sm:$0xff] %v485
  %s488 = scalar_lea.vmem %s0, 664
  %v489 = vld [vmem:[%s488] sm:$0xff]
  %s490 = scalar_lea.vmem %s1, 568
  %491 = vst [vmem:[%s490] sm:$0xff] %v489
  %s492 = scalar_lea.vmem %s0, 1560
  %v493 = vld [vmem:[%s492] sm:$0xff]
  %s494 = scalar_lea.vmem %s1, 1464
  %495 = vst [vmem:[%s494] sm:$0xff] %v493
  %s496 = scalar_lea.vmem %s0, 776
  %v497 = vld [vmem:[%s496] sm:$0xff]
  %s498 = scalar_lea.vmem %s1, 680
  %499 = vst [vmem:[%s498] sm:$0xff] %v497
  %s500 = scalar_lea.vmem %s0, 1672
  %v501 = vld [vmem:[%s500] sm:$0xff]
  %s502 = scalar_lea.vmem %s1, 1576
  %503 = vst [vmem:[%s502] sm:$0xff] %v501
  %s504 = scalar_lea.vmem %s0, 888
  %v505 = vld [vmem:[%s504] sm:$0xff]
  %s506 = scalar_lea.vmem %s1, 792
  %507 = vst [vmem:[%s506] sm:$0xff] %v505
  %s508 = scalar_lea.vmem %s0, 1784
  %v509 = vld [vmem:[%s508] sm:$0xff]
  %s510 = scalar_lea.vmem %s1, 1688
  %511 = vst [vmem:[%s510] sm:$0xff] %v509
  %s512 = scalar_lea.vmem %s0, 88
  %v513 = vld [vmem:[%s512] sm:$0xff]
  %s514 = scalar_lea.vmem %s1, 24
  %515 = vst [vmem:[%s514] sm:$0xff] %v513
  %s516 = scalar_lea.vmem %s0, 984
  %v517 = vld [vmem:[%s516] sm:$0xff]
  %s518 = scalar_lea.vmem %s1, 920
  %519 = vst [vmem:[%s518] sm:$0xff] %v517
  %s520 = scalar_lea.vmem %s0, 200
  %v521 = vld [vmem:[%s520] sm:$0xff]
  %s522 = scalar_lea.vmem %s1, 136
  %523 = vst [vmem:[%s522] sm:$0xff] %v521
  %s524 = scalar_lea.vmem %s0, 1096
  %v525 = vld [vmem:[%s524] sm:$0xff]
  %s526 = scalar_lea.vmem %s1, 1032
  %527 = vst [vmem:[%s526] sm:$0xff] %v525
  %s528 = scalar_lea.vmem %s0, 312
  %v529 = vld [vmem:[%s528] sm:$0xff]
  %s530 = scalar_lea.vmem %s1, 248
  %531 = vst [vmem:[%s530] sm:$0xff] %v529
  %s532 = scalar_lea.vmem %s0, 1208
  %v533 = vld [vmem:[%s532] sm:$0xff]
  %s534 = scalar_lea.vmem %s1, 1144
  %535 = vst [vmem:[%s534] sm:$0xff] %v533
  %s536 = scalar_lea.vmem %s0, 424
  %v537 = vld [vmem:[%s536] sm:$0xff]
  %s538 = scalar_lea.vmem %s1, 360
  %539 = vst [vmem:[%s538] sm:$0xff] %v537
  %s540 = scalar_lea.vmem %s0, 1320
  %v541 = vld [vmem:[%s540] sm:$0xff]
  %s542 = scalar_lea.vmem %s1, 1256
  %543 = vst [vmem:[%s542] sm:$0xff] %v541
  %s544 = scalar_lea.vmem %s0, 536
  %v545 = vld [vmem:[%s544] sm:$0xff]
  %s546 = scalar_lea.vmem %s1, 472
  %547 = vst [vmem:[%s546] sm:$0xff] %v545
  %s548 = scalar_lea.vmem %s0, 1432
  %v549 = vld [vmem:[%s548] sm:$0xff]
  %s550 = scalar_lea.vmem %s1, 1368
  %551 = vst [vmem:[%s550] sm:$0xff] %v549
  %s552 = scalar_lea.vmem %s0, 648
  %v553 = vld [vmem:[%s552] sm:$0xff]
  %s554 = scalar_lea.vmem %s1, 584
  %555 = vst [vmem:[%s554] sm:$0xff] %v553
  %s556 = scalar_lea.vmem %s0, 1544
  %v557 = vld [vmem:[%s556] sm:$0xff]
  %s558 = scalar_lea.vmem %s1, 1480
  %559 = vst [vmem:[%s558] sm:$0xff] %v557
  %s560 = scalar_lea.vmem %s0, 760
  %v561 = vld [vmem:[%s560] sm:$0xff]
  %s562 = scalar_lea.vmem %s1, 696
  %563 = vst [vmem:[%s562] sm:$0xff] %v561
  %s564 = scalar_lea.vmem %s0, 1656
  %v565 = vld [vmem:[%s564] sm:$0xff]
  %s566 = scalar_lea.vmem %s1, 1592
  %567 = vst [vmem:[%s566] sm:$0xff] %v565
  %s568 = scalar_lea.vmem %s0, 872
  %v569 = vld [vmem:[%s568] sm:$0xff]
  %s570 = scalar_lea.vmem %s1, 808
  %571 = vst [vmem:[%s570] sm:$0xff] %v569
  %s572 = scalar_lea.vmem %s0, 1768
  %v573 = vld [vmem:[%s572] sm:$0xff]
  %s574 = scalar_lea.vmem %s1, 1704
  %575 = vst [vmem:[%s574] sm:$0xff] %v573
  %s576 = scalar_lea.vmem %s0, 72
  %v577 = vld [vmem:[%s576] sm:$0xff]
  %s578 = scalar_lea.vmem %s1, 40
  %579 = vst [vmem:[%s578] sm:$0xff] %v577
  %s580 = scalar_lea.vmem %s0, 968
  %v581 = vld [vmem:[%s580] sm:$0xff]
  %s582 = scalar_lea.vmem %s1, 936
  %583 = vst [vmem:[%s582] sm:$0xff] %v581
  %s584 = scalar_lea.vmem %s0, 184
  %v585 = vld [vmem:[%s584] sm:$0xff]
  %s586 = scalar_lea.vmem %s1, 152
  %587 = vst [vmem:[%s586] sm:$0xff] %v585
  %s588 = scalar_lea.vmem %s0, 1080
  %v589 = vld [vmem:[%s588] sm:$0xff]
  %s590 = scalar_lea.vmem %s1, 1048
  %591 = vst [vmem:[%s590] sm:$0xff] %v589
  %s592 = scalar_lea.vmem %s0, 296
  %v593 = vld [vmem:[%s592] sm:$0xff]
  %s594 = scalar_lea.vmem %s1, 264
  %595 = vst [vmem:[%s594] sm:$0xff] %v593
  %s596 = scalar_lea.vmem %s0, 1192
  %v597 = vld [vmem:[%s596] sm:$0xff]
  %s598 = scalar_lea.vmem %s1, 1160
  %599 = vst [vmem:[%s598] sm:$0xff] %v597
  %s600 = scalar_lea.vmem %s0, 408
  %v601 = vld [vmem:[%s600] sm:$0xff]
  %s602 = scalar_lea.vmem %s1, 376
  %603 = vst [vmem:[%s602] sm:$0xff] %v601
  %s604 = scalar_lea.vmem %s0, 1304
  %v605 = vld [vmem:[%s604] sm:$0xff]
  %s606 = scalar_lea.vmem %s1, 1272
  %607 = vst [vmem:[%s606] sm:$0xff] %v605
  %s608 = scalar_lea.vmem %s0, 520
  %v609 = vld [vmem:[%s608] sm:$0xff]
  %s610 = scalar_lea.vmem %s1, 488
  %611 = vst [vmem:[%s610] sm:$0xff] %v609
  %s612 = scalar_lea.vmem %s0, 1416
  %v613 = vld [vmem:[%s612] sm:$0xff]
  %s614 = scalar_lea.vmem %s1, 1384
  %615 = vst [vmem:[%s614] sm:$0xff] %v613
  %s616 = scalar_lea.vmem %s0, 632
  %v617 = vld [vmem:[%s616] sm:$0xff]
  %s618 = scalar_lea.vmem %s1, 600
  %619 = vst [vmem:[%s618] sm:$0xff] %v617
  %s620 = scalar_lea.vmem %s0, 1528
  %v621 = vld [vmem:[%s620] sm:$0xff]
  %s622 = scalar_lea.vmem %s1, 1496
  %623 = vst [vmem:[%s622] sm:$0xff] %v621
  %s624 = scalar_lea.vmem %s0, 744
  %v625 = vld [vmem:[%s624] sm:$0xff]
  %s626 = scalar_lea.vmem %s1, 712
  %627 = vst [vmem:[%s626] sm:$0xff] %v625
  %s628 = scalar_lea.vmem %s0, 1640
  %v629 = vld [vmem:[%s628] sm:$0xff]
  %s630 = scalar_lea.vmem %s1, 1608
  %631 = vst [vmem:[%s630] sm:$0xff] %v629
  %s632 = scalar_lea.vmem %s0, 856
  %v633 = vld [vmem:[%s632] sm:$0xff]
  %s634 = scalar_lea.vmem %s1, 824
  %635 = vst [vmem:[%s634] sm:$0xff] %v633
  %s636 = scalar_lea.vmem %s0, 1752
  %v637 = vld [vmem:[%s636] sm:$0xff]
  %s638 = scalar_lea.vmem %s1, 1720
  %639 = vst [vmem:[%s638] sm:$0xff] %v637
  %s640 = scalar_lea.vmem %s0, 56
  %v641 = vld [vmem:[%s640] sm:$0xff]
  %s642 = scalar_lea.vmem %s1, 56
  %643 = vst [vmem:[%s642] sm:$0xff] %v641
  %s644 = scalar_lea.vmem %s0, 952
  %v645 = vld [vmem:[%s644] sm:$0xff]
  %s646 = scalar_lea.vmem %s1, 952
  %647 = vst [vmem:[%s646] sm:$0xff] %v645
  %s648 = scalar_lea.vmem %s0, 168
  %v649 = vld [vmem:[%s648] sm:$0xff]
  %s650 = scalar_lea.vmem %s1, 168
  %651 = vst [vmem:[%s650] sm:$0xff] %v649
  %s652 = scalar_lea.vmem %s0, 1064
  %v653 = vld [vmem:[%s652] sm:$0xff]
  %s654 = scalar_lea.vmem %s1, 1064
  %655 = vst [vmem:[%s654] sm:$0xff] %v653
  %s656 = scalar_lea.vmem %s0, 280
  %v657 = vld [vmem:[%s656] sm:$0xff]
  %s658 = scalar_lea.vmem %s1, 280
  %659 = vst [vmem:[%s658] sm:$0xff] %v657
  %s660 = scalar_lea.vmem %s0, 1176
  %v661 = vld [vmem:[%s660] sm:$0xff]
  %s662 = scalar_lea.vmem %s1, 1176
  %663 = vst [vmem:[%s662] sm:$0xff] %v661
  %s664 = scalar_lea.vmem %s0, 392
  %v665 = vld [vmem:[%s664] sm:$0xff]
  %s666 = scalar_lea.vmem %s1, 392
  %667 = vst [vmem:[%s666] sm:$0xff] %v665
  %s668 = scalar_lea.vmem %s0, 1288
  %v669 = vld [vmem:[%s668] sm:$0xff]
  %s670 = scalar_lea.vmem %s1, 1288
  %671 = vst [vmem:[%s670] sm:$0xff] %v669
  %s672 = scalar_lea.vmem %s0, 504
  %v673 = vld [vmem:[%s672] sm:$0xff]
  %s674 = scalar_lea.vmem %s1, 504
  %675 = vst [vmem:[%s674] sm:$0xff] %v673
  %s676 = scalar_lea.vmem %s0, 1400
  %v677 = vld [vmem:[%s676] sm:$0xff]
  %s678 = scalar_lea.vmem %s1, 1400
  %679 = vst [vmem:[%s678] sm:$0xff] %v677
  %s680 = scalar_lea.vmem %s0, 616
  %v681 = vld [vmem:[%s680] sm:$0xff]
  %s682 = scalar_lea.vmem %s1, 616
  %683 = vst [vmem:[%s682] sm:$0xff] %v681
  %s684 = scalar_lea.vmem %s0, 1512
  %v685 = vld [vmem:[%s684] sm:$0xff]
  %s686 = scalar_lea.vmem %s1, 1512
  %687 = vst [vmem:[%s686] sm:$0xff] %v685
  %s688 = scalar_lea.vmem %s0, 728
  %v689 = vld [vmem:[%s688] sm:$0xff]
  %s690 = scalar_lea.vmem %s1, 728
  %691 = vst [vmem:[%s690] sm:$0xff] %v689
  %s692 = scalar_lea.vmem %s0, 1624
  %v693 = vld [vmem:[%s692] sm:$0xff]
  %s694 = scalar_lea.vmem %s1, 1624
  %695 = vst [vmem:[%s694] sm:$0xff] %v693
  %s696 = scalar_lea.vmem %s0, 840
  %v697 = vld [vmem:[%s696] sm:$0xff]
  %s698 = scalar_lea.vmem %s1, 840
  %699 = vst [vmem:[%s698] sm:$0xff] %v697
  %s700 = scalar_lea.vmem %s0, 1736
  %v701 = vld [vmem:[%s700] sm:$0xff]
  %s702 = scalar_lea.vmem %s1, 1736
  %703 = vst [vmem:[%s702] sm:$0xff] %v701
  %s704 = scalar_lea.vmem %s0, 40
  %v705 = vld [vmem:[%s704] sm:$0xff]
  %s706 = scalar_lea.vmem %s1, 72
  %707 = vst [vmem:[%s706] sm:$0xff] %v705
  %s708 = scalar_lea.vmem %s0, 936
  %v709 = vld [vmem:[%s708] sm:$0xff]
  %s710 = scalar_lea.vmem %s1, 968
  %711 = vst [vmem:[%s710] sm:$0xff] %v709
  %s712 = scalar_lea.vmem %s0, 152
  %v713 = vld [vmem:[%s712] sm:$0xff]
  %s714 = scalar_lea.vmem %s1, 184
  %715 = vst [vmem:[%s714] sm:$0xff] %v713
  %s716 = scalar_lea.vmem %s0, 1048
  %v717 = vld [vmem:[%s716] sm:$0xff]
  %s718 = scalar_lea.vmem %s1, 1080
  %719 = vst [vmem:[%s718] sm:$0xff] %v717
  %s720 = scalar_lea.vmem %s0, 264
  %v721 = vld [vmem:[%s720] sm:$0xff]
  %s722 = scalar_lea.vmem %s1, 296
  %723 = vst [vmem:[%s722] sm:$0xff] %v721
  %s724 = scalar_lea.vmem %s0, 1160
  %v725 = vld [vmem:[%s724] sm:$0xff]
  %s726 = scalar_lea.vmem %s1, 1192
  %727 = vst [vmem:[%s726] sm:$0xff] %v725
  %s728 = scalar_lea.vmem %s0, 376
  %v729 = vld [vmem:[%s728] sm:$0xff]
  %s730 = scalar_lea.vmem %s1, 408
  %731 = vst [vmem:[%s730] sm:$0xff] %v729
  %s732 = scalar_lea.vmem %s0, 1272
  %v733 = vld [vmem:[%s732] sm:$0xff]
  %s734 = scalar_lea.vmem %s1, 1304
  %735 = vst [vmem:[%s734] sm:$0xff] %v733
  %s736 = scalar_lea.vmem %s0, 488
  %v737 = vld [vmem:[%s736] sm:$0xff]
  %s738 = scalar_lea.vmem %s1, 520
  %739 = vst [vmem:[%s738] sm:$0xff] %v737
  %s740 = scalar_lea.vmem %s0, 1384
  %v741 = vld [vmem:[%s740] sm:$0xff]
  %s742 = scalar_lea.vmem %s1, 1416
  %743 = vst [vmem:[%s742] sm:$0xff] %v741
  %s744 = scalar_lea.vmem %s0, 600
  %v745 = vld [vmem:[%s744] sm:$0xff]
  %s746 = scalar_lea.vmem %s1, 632
  %747 = vst [vmem:[%s746] sm:$0xff] %v745
  %s748 = scalar_lea.vmem %s0, 1496
  %v749 = vld [vmem:[%s748] sm:$0xff]
  %s750 = scalar_lea.vmem %s1, 1528
  %751 = vst [vmem:[%s750] sm:$0xff] %v749
  %s752 = scalar_lea.vmem %s0, 712
  %v753 = vld [vmem:[%s752] sm:$0xff]
  %s754 = scalar_lea.vmem %s1, 744
  %755 = vst [vmem:[%s754] sm:$0xff] %v753
  %s756 = scalar_lea.vmem %s0, 1608
  %v757 = vld [vmem:[%s756] sm:$0xff]
  %s758 = scalar_lea.vmem %s1, 1640
  %759 = vst [vmem:[%s758] sm:$0xff] %v757
  %s760 = scalar_lea.vmem %s0, 824
  %v761 = vld [vmem:[%s760] sm:$0xff]
  %s762 = scalar_lea.vmem %s1, 856
  %763 = vst [vmem:[%s762] sm:$0xff] %v761
  %s764 = scalar_lea.vmem %s0, 1720
  %v765 = vld [vmem:[%s764] sm:$0xff]
  %s766 = scalar_lea.vmem %s1, 1752
  %767 = vst [vmem:[%s766] sm:$0xff] %v765
  %s768 = scalar_lea.vmem %s0, 24
  %v769 = vld [vmem:[%s768] sm:$0xff]
  %s770 = scalar_lea.vmem %s1, 88
  %771 = vst [vmem:[%s770] sm:$0xff] %v769
  %s772 = scalar_lea.vmem %s0, 920
  %v773 = vld [vmem:[%s772] sm:$0xff]
  %s774 = scalar_lea.vmem %s1, 984
  %775 = vst [vmem:[%s774] sm:$0xff] %v773
  %s776 = scalar_lea.vmem %s0, 136
  %v777 = vld [vmem:[%s776] sm:$0xff]
  %s778 = scalar_lea.vmem %s1, 200
  %779 = vst [vmem:[%s778] sm:$0xff] %v777
  %s780 = scalar_lea.vmem %s0, 1032
  %v781 = vld [vmem:[%s780] sm:$0xff]
  %s782 = scalar_lea.vmem %s1, 1096
  %783 = vst [vmem:[%s782] sm:$0xff] %v781
  %s784 = scalar_lea.vmem %s0, 248
  %v785 = vld [vmem:[%s784] sm:$0xff]
  %s786 = scalar_lea.vmem %s1, 312
  %787 = vst [vmem:[%s786] sm:$0xff] %v785
  %s788 = scalar_lea.vmem %s0, 1144
  %v789 = vld [vmem:[%s788] sm:$0xff]
  %s790 = scalar_lea.vmem %s1, 1208
  %791 = vst [vmem:[%s790] sm:$0xff] %v789
  %s792 = scalar_lea.vmem %s0, 360
  %v793 = vld [vmem:[%s792] sm:$0xff]
  %s794 = scalar_lea.vmem %s1, 424
  %795 = vst [vmem:[%s794] sm:$0xff] %v793
  %s796 = scalar_lea.vmem %s0, 1256
  %v797 = vld [vmem:[%s796] sm:$0xff]
  %s798 = scalar_lea.vmem %s1, 1320
  %799 = vst [vmem:[%s798] sm:$0xff] %v797
  %s800 = scalar_lea.vmem %s0, 472
  %v801 = vld [vmem:[%s800] sm:$0xff]
  %s802 = scalar_lea.vmem %s1, 536
  %803 = vst [vmem:[%s802] sm:$0xff] %v801
  %s804 = scalar_lea.vmem %s0, 1368
  %v805 = vld [vmem:[%s804] sm:$0xff]
  %s806 = scalar_lea.vmem %s1, 1432
  %807 = vst [vmem:[%s806] sm:$0xff] %v805
  %s808 = scalar_lea.vmem %s0, 584
  %v809 = vld [vmem:[%s808] sm:$0xff]
  %s810 = scalar_lea.vmem %s1, 648
  %811 = vst [vmem:[%s810] sm:$0xff] %v809
  %s812 = scalar_lea.vmem %s0, 1480
  %v813 = vld [vmem:[%s812] sm:$0xff]
  %s814 = scalar_lea.vmem %s1, 1544
  %815 = vst [vmem:[%s814] sm:$0xff] %v813
  %s816 = scalar_lea.vmem %s0, 696
  %v817 = vld [vmem:[%s816] sm:$0xff]
  %s818 = scalar_lea.vmem %s1, 760
  %819 = vst [vmem:[%s818] sm:$0xff] %v817
  %s820 = scalar_lea.vmem %s0, 1592
  %v821 = vld [vmem:[%s820] sm:$0xff]
  %s822 = scalar_lea.vmem %s1, 1656
  %823 = vst [vmem:[%s822] sm:$0xff] %v821
  %s824 = scalar_lea.vmem %s0, 808
  %v825 = vld [vmem:[%s824] sm:$0xff]
  %s826 = scalar_lea.vmem %s1, 872
  %827 = vst [vmem:[%s826] sm:$0xff] %v825
  %s828 = scalar_lea.vmem %s0, 1704
  %v829 = vld [vmem:[%s828] sm:$0xff]
  %s830 = scalar_lea.vmem %s1, 1768
  %831 = vst [vmem:[%s830] sm:$0xff] %v829
  %s832 = scalar_lea.vmem %s0, 8
  %v833 = vld [vmem:[%s832] sm:$0xff]
  %s834 = scalar_lea.vmem %s1, 104
  %835 = vst [vmem:[%s834] sm:$0xff] %v833
  %s836 = scalar_lea.vmem %s0, 904
  %v837 = vld [vmem:[%s836] sm:$0xff]
  %s838 = scalar_lea.vmem %s1, 1000
  %839 = vst [vmem:[%s838] sm:$0xff] %v837
  %s840 = scalar_lea.vmem %s0, 120
  %v841 = vld [vmem:[%s840] sm:$0xff]
  %s842 = scalar_lea.vmem %s1, 216
  %843 = vst [vmem:[%s842] sm:$0xff] %v841
  %s844 = scalar_lea.vmem %s0, 1016
  %v845 = vld [vmem:[%s844] sm:$0xff]
  %s846 = scalar_lea.vmem %s1, 1112
  %847 = vst [vmem:[%s846] sm:$0xff] %v845
  %s848 = scalar_lea.vmem %s0, 232
  %v849 = vld [vmem:[%s848] sm:$0xff]
  %s850 = scalar_lea.vmem %s1, 328
  %851 = vst [vmem:[%s850] sm:$0xff] %v849
  %s852 = scalar_lea.vmem %s0, 1128
  %v853 = vld [vmem:[%s852] sm:$0xff]
  %s854 = scalar_lea.vmem %s1, 1224
  %855 = vst [vmem:[%s854] sm:$0xff] %v853
  %s856 = scalar_lea.vmem %s0, 344
  %v857 = vld [vmem:[%s856] sm:$0xff]
  %s858 = scalar_lea.vmem %s1, 440
  %859 = vst [vmem:[%s858] sm:$0xff] %v857
  %s860 = scalar_lea.vmem %s0, 1240
  %v861 = vld [vmem:[%s860] sm:$0xff]
  %s862 = scalar_lea.vmem %s1, 1336
  %863 = vst [vmem:[%s862] sm:$0xff] %v861
  %s864 = scalar_lea.vmem %s0, 456
  %v865 = vld [vmem:[%s864] sm:$0xff]
  %s866 = scalar_lea.vmem %s1, 552
  %867 = vst [vmem:[%s866] sm:$0xff] %v865
  %s868 = scalar_lea.vmem %s0, 1352
  %v869 = vld [vmem:[%s868] sm:$0xff]
  %s870 = scalar_lea.vmem %s1, 1448
  %871 = vst [vmem:[%s870] sm:$0xff] %v869
  %s872 = scalar_lea.vmem %s0, 568
  %v873 = vld [vmem:[%s872] sm:$0xff]
  %s874 = scalar_lea.vmem %s1, 664
  %875 = vst [vmem:[%s874] sm:$0xff] %v873
  %s876 = scalar_lea.vmem %s0, 1464
  %v877 = vld [vmem:[%s876] sm:$0xff]
  %s878 = scalar_lea.vmem %s1, 1560
  %879 = vst [vmem:[%s878] sm:$0xff] %v877
  %s880 = scalar_lea.vmem %s0, 680
  %v881 = vld [vmem:[%s880] sm:$0xff]
  %s882 = scalar_lea.vmem %s1, 776
  %883 = vst [vmem:[%s882] sm:$0xff] %v881
  %s884 = scalar_lea.vmem %s0, 1576
  %v885 = vld [vmem:[%s884] sm:$0xff]
  %s886 = scalar_lea.vmem %s1, 1672
  %887 = vst [vmem:[%s886] sm:$0xff] %v885
  %s888 = scalar_lea.vmem %s0, 792
  %v889 = vld [vmem:[%s888] sm:$0xff]
  %s890 = scalar_lea.vmem %s1, 888
  %891 = vst [vmem:[%s890] sm:$0xff] %v889
  %s892 = scalar_lea.vmem %s0, 1688
  %v893 = vld [vmem:[%s892] sm:$0xff]
  %s894 = scalar_lea.vmem %s1, 1784
  %895 = vst [vmem:[%s894] sm:$0xff] %v893

</llo_original>
